<compile_context>
chip_gen: v7x
topology: tpu7x:2x2x1
jax: 0.10.0
libtpu: 0.0.40
codegen_flags: <defaults>
</compile_context>

<pallas_src>
import jax
import jax.numpy as jnp
from jax.experimental import pallas as pl
from jax.experimental.pallas import tpu as pltpu


def _make_wff_kernel(head_axis):
    """Builds the kernel body; head_axis = grid axis index of the (innermost) head loop."""

    def kernel(alpha_ref,          # SMEM prefetch: [N+1] = normalized alpha, then sum(alpha)
               x_ref,              # VMEM: (TL, D)  one (row-tile, head)
               w1_ref, b1_ref,     # VMEM: (D, H), (1, H)
               w2_ref, b2_ref,     # VMEM: (H, O), (1, O)
               o_ref,              # VMEM out: (TL, O)
               acc_ref):           # VMEM scratch: (TL, H) f32
        n = pl.program_id(head_axis)
        num_heads = pl.num_programs(head_axis)

        @pl.when(n == 0)
        def _():
            acc_ref[...] = jnp.zeros_like(acc_ref)

        a_n = alpha_ref[n]   # strictly positive (softmax / sigmoid) -> relu commutes with it
        # Fold alpha into the (TL, D) x tile (H/D times cheaper than scaling (TL, H)),
        # so the per-(TL,H) chain below is only bias-add, relu, accumulate.
        x_scaled = (x_ref[...] * a_n).astype(w1_ref.dtype)
        h = jnp.dot(x_scaled, w1_ref[...], preferred_element_type=jnp.float32)
        h = jnp.maximum(h + a_n * b1_ref[...].astype(jnp.float32), 0.0)
        # TODO(synk): F.dropout with p>0 in training mode (stateful RNG) is not implemented;
        # the dropout=0.0 / eval-mode identity path is reproduced here.
        acc_ref[...] += h

        @pl.when(n == num_heads - 1)
        def _():
            out = jnp.dot(acc_ref[...].astype(w2_ref.dtype), w2_ref[...],
                          preferred_element_type=jnp.float32)
            # b2 contributes sum(alpha) * b2 (== b2 exactly for softmax-normalized alpha).
            out = out + alpha_ref[num_heads] * b2_ref[...].astype(jnp.float32)
            o_ref[...] = out.astype(o_ref.dtype)

    return kernel


def _vmem_limit_bytes():
    """Generation-aware scoped-VMEM limit (~80% of physical); safe fallback otherwise."""
    try:
        cap = getattr(pltpu.get_tpu_info(), "vmem_capacity_bytes", None)
        if cap:
            return int(cap * 0.8)
    except Exception:
        pass
    return 48 * 1024 * 1024   # safe on every generation (v7x physical VMEM = 64 MiB / TC)


_MIN_SUBLANE = {4: 8, 2: 16, 1: 32}   # dtype-aware minimum row tile


def _row_budget(vmem_limit, D, H, O, x_isz, w_isz, o_isz):
    """Max row-tile size that fits VMEM with 1x-resident weights."""
    weights = (D * H + H) * w_isz + (H * O + O) * w_isz        # single-buffered residency
    headroom = 2 * 1024 * 1024                                  # Mosaic internal scratch
    budget = vmem_limit - weights - headroom
    per_row = 2 * D * x_isz + H * 4 + 2 * O * o_isz             # x(2-buf) + f32 acc + out(2-buf)
    return max(budget // per_row, 0)


def _pick_tile(extent, itemsize, max_rows, other_parallel):
    """Largest ladder tile dividing `extent` that fits the VMEM row budget, preferring
    configurations with >= 2 total parallel blocks (megacore / 2-TC chips)."""
    min_tile = _MIN_SUBLANE.get(itemsize, 8)
    ladder = [t for t in (1024, 512, 256, 128, 64, 32, 16, 8) if t >= min_tile]
    for want_two in (True, False):
        for t in ladder:
            if t > max(max_rows, min_tile):
                continue
            if extent % t != 0:
                continue
            if want_two and other_parallel * (extent // t) < 2:
                continue
            return t
    return extent   # full extent is always a legal block shape


def weighted_feed_forward(x, w1, b1, w2, b2, alpha,
                          sigmoid_weight=False, expand_alpha_norm=False,
                          mxu_dtype=None):
    """x: [B, N, L, D]; returns [B, L, O].  mxu_dtype (e.g. bf16) casts only MXU operands."""
    B, N, L, D = x.shape
    H = w1.shape[1]
    O = w2.shape[1]
    out_dtype = x.dtype

    # alpha normalization (tiny, glue-level) + sum(alpha) for the epilogue b2 scale.
    if sigmoid_weight:
        alpha_n = jax.nn.sigmoid(alpha)
    else:
        alpha_n = jax.nn.softmax(alpha, axis=0)
        if expand_alpha_norm:
            alpha_n = alpha_n * N
    alpha_n = alpha_n.astype(jnp.float32)
    alpha_ext = jnp.concatenate([alpha_n, jnp.sum(alpha_n, keepdims=True)])

    # Optionally feed the MXU in bf16 (v6e/v7x); elementwise & accumulation stay f32 in-kernel.
    if mxu_dtype is not None:
        x = x.astype(mxu_dtype)
        w1 = w1.astype(mxu_dtype)
        w2 = w2.astype(mxu_dtype)

    b1_2d = b1.reshape(1, H).astype(jnp.float32)
    b2_2d = b2.reshape(1, O).astype(jnp.float32)

    vmem_limit = _vmem_limit_bytes()
    x_isz = x.dtype.itemsize
    w_isz = w1.dtype.itemsize
    o_isz = jnp.dtype(out_dtype).itemsize
    max_rows = _row_budget(vmem_limit, D, H, O, x_isz, w_isz, o_isz)

    # Short sequences with B > 1: flatten batch into the matmul M axis so the MXU M dim
    # isn't starved (demo: M goes 16 -> 32). Long sequences keep the original layout.
    flatten = (B > 1) and (L < 256)

    if flatten:
        M = B * L
        x_k = jnp.transpose(x, (1, 0, 2, 3)).reshape(N, M, D)
        TM = _pick_tile(M, x_isz, max_rows, other_parallel=1)
        grid = (M // TM, N)
        kernel = _make_wff_kernel(head_axis=1)
        semantics = ("parallel", "arbitrary")
        imap_w = lambda m, n, a: (0, 0)
        x_spec = pl.BlockSpec((pl.Squeezed(), TM, D), lambda m, n, a: (n, m, 0))
        out_spec = pl.BlockSpec((TM, O), lambda m, n, a: (m, 0))
        out_shape = jax.ShapeDtypeStruct((M, O), out_dtype)
        scratch = [pltpu.VMEM((TM, H), jnp.float32)]
        args = (alpha_ext, x_k, w1, b1_2d, w2, b2_2d)
    else:
        TL = _pick_tile(L, x_isz, max_rows, other_parallel=B)
        grid = (B, L // TL, N)
        kernel = _make_wff_kernel(head_axis=2)
        semantics = ("parallel", "parallel", "arbitrary")
        imap_w = lambda b, l, n, a: (0, 0)
        x_spec = pl.BlockSpec((pl.Squeezed(), pl.Squeezed(), TL, D),
                              lambda b, l, n, a: (b, n, l, 0))
        out_spec = pl.BlockSpec((pl.Squeezed(), TL, O), lambda b, l, n, a: (b, l, 0))
        out_shape = jax.ShapeDtypeStruct((B, L, O), out_dtype)
        scratch = [pltpu.VMEM((TL, H), jnp.float32)]
        args = (alpha_ext, x, w1, b1_2d, w2, b2_2d)

    weight_params = [((D, H), imap_w), ((1, H), imap_w), ((H, O), imap_w), ((1, O), imap_w)]

    nbytes = lambda a: a.size * a.dtype.itemsize
    cost = pl.CostEstimate(
        flops=2 * B * N * L * D * H + 2 * B * L * H * O,
        transcendentals=0,
        bytes_accessed=(B * N * L * D * x_isz + nbytes(w1) + nbytes(b1_2d)
                        + nbytes(w2) + nbytes(b2_2d) + B * L * O * o_isz),
    )

    def build_call(single_buffer_weights):
        if single_buffer_weights:
            # Constant index maps -> fetched once; single buffer (no wasted 2nd VMEM buffer).
            wspec = lambda shape, imap: pl.BlockSpec(shape, imap,
                                                     pipeline_mode=pl.Buffered(1))
        else:
            wspec = lambda shape, imap: pl.BlockSpec(shape, imap)
        # Note: x keeps the default double-buffering; deepen to pl.Buffered(3) only if a
        # profile shows exposed DMA on the head axis (small D / short per-step compute).
        in_specs = [x_spec] + [wspec(s, m) for s, m in weight_params]
        return pl.pallas_call(
            kernel,
            out_shape=out_shape,
            grid_spec=pltpu.PrefetchScalarGridSpec(
                num_scalar_prefetch=1,
                grid=grid,
                in_specs=in_specs,
                out_specs=out_spec,
                scratch_shapes=scratch),
            compiler_params=pltpu.CompilerParams(
                dimension_semantics=semantics,
                vmem_limit_bytes=vmem_limit),
            cost_estimate=cost,
        )

    try:
        y = build_call(True)(*args)
    except Exception:
        # Fallback: default double-buffered weights (more VMEM, always supported).
        y = build_call(False)(*args)

    if flatten:
        y = y.reshape(B, L, O)
    return y


def _xavier_uniform(key, fan_in, fan_out, dtype=jnp.float32):
    bound = (6.0 / (fan_in + fan_out)) ** 0.5
    return jax.random.uniform(key, (fan_in, fan_out), dtype,
                              minval=-bound, maxval=bound)


if __name__ == "__main__":
    # Small but lane-friendly shapes: D, H, O multiples of 128 (prefer 256-multiples on
    # v6e/v7x for full MXU width); L multiple of 8.
    B, N, L = 2, 4, 16             # batch, num_heads, seq_len
    D, H = 128, 256                # input_size, hidden_size
    O = D                          # output_size defaults to input_size

    key = jax.random.PRNGKey(0)
    kx, kw1, kw2, ka = jax.random.split(key, 4)

    x = jax.random.normal(kx, (B, N, L, D), dtype=jnp.float32)
    w1 = _xavier_uniform(kw1, D, H)            # input_transform weight
    b1 = jnp.zeros((H,), jnp.float32)          # input_transform bias (init 0 in module)
    w2 = _xavier_uniform(kw2, H, O)            # output_transform weight
    b2 = jnp.full((O,), 0.1, jnp.float32)      # nonzero to exercise the b2 epilogue scaling
    alpha = jax.random.normal(ka, (N,), dtype=jnp.float32)

    def reference(xv, sigmoid_weight=False, expand_alpha_norm=False):
        h = jax.nn.relu(xv @ w1 + b1)
        out = h @ w2 + b2
        if sigmoid_weight:
            a = jax.nn.sigmoid(alpha)
        else:
            a = jax.nn.softmax(alpha, axis=0)
            if expand_alpha_norm:
                a = a * xv.shape[1]
        return jnp.einsum('n,bnld->bld', a, out)

    # 1) Default module config (softmax alpha); B>1 & short L -> flattened B*L path.
    y = weighted_feed_forward(x, w1, b1, w2, b2, alpha)
    jax.block_until_ready(y)
    assert y.shape == (B, L, O)
    assert jnp.allclose(y, reference(x), atol=2e-3, rtol=2e-3)

    # 2) sigmoid_weight=True exercises sum(alpha) != 1 (scaled-b2 epilogue correctness).
    y_sig = weighted_feed_forward(x, w1, b1, w2, b2, alpha, sigmoid_weight=True)
    jax.block_until_ready(y_sig)
    assert jnp.allclose(y_sig, reference(x, sigmoid_weight=True), atol=2e-3, rtol=2e-3)

    # 3) B=1 exercises the non-flattened (batch, L-tile, head) grid path.
    x1 = x[:1]
    y1 = weighted_feed_forward(x1, w1, b1, w2, b2, alpha)
    jax.block_until_ready(y1)
    assert jnp.allclose(y1, reference(x1), atol=2e-3, rtol=2e-3)

    # 4) bf16 MXU operands (v6e/v7x fast path); accumulation stays f32, so tolerance is loose
    #    only because weights/activations are quantized once to bf16.
    y_bf = weighted_feed_forward(x, w1, b1, w2, b2, alpha, mxu_dtype=jnp.bfloat16)
    jax.block_until_ready(y_bf)
    assert jnp.allclose(y_bf.astype(jnp.float32), reference(x), atol=1e-1, rtol=1e-1)

    print("KERNEL_OK")
</pallas_src>

<mosaic_0001>
module attributes {stable_mosaic.version = 11 : i64} {
  func.func @kernel(%arg0: i32, %arg1: i32, %arg2: memref<5xf32, #tpu.memory_space<smem>>, %arg3: memref<1x16x128xf32, #tpu.memory_space<vmem>>, %arg4: memref<128x256xf32, #tpu.memory_space<vmem>>, %arg5: memref<1x256xf32, #tpu.memory_space<vmem>>, %arg6: memref<256x128xf32, #tpu.memory_space<vmem>>, %arg7: memref<1x128xf32, #tpu.memory_space<vmem>>, %arg8: memref<16x128xf32, #tpu.memory_space<vmem>>, %arg9: memref<16x256xf32, #tpu.memory_space<vmem>>) attributes {dimension_semantics = [#tpu.dimension_semantics<parallel>, #tpu.dimension_semantics<arbitrary>], iteration_bounds = array<i64: 2, 4>, scalar_prefetch = 1 : i64, scratch_operands = 1 : i64, tpu.core_type = #tpu.core_type<tc>, window_params = [{transform_indices = @transform_0, window_bounds = array<i64: 1, 16, 128>}, {pipeline_mode = #tpu.pipeline_mode<synchronous>, transform_indices = @transform_1, window_bounds = array<i64: 128, 256>}, {pipeline_mode = #tpu.pipeline_mode<synchronous>, transform_indices = @transform_2, window_bounds = array<i64: 1, 256>}, {pipeline_mode = #tpu.pipeline_mode<synchronous>, transform_indices = @transform_3, window_bounds = array<i64: 256, 128>}, {pipeline_mode = #tpu.pipeline_mode<synchronous>, transform_indices = @transform_4, window_bounds = array<i64: 1, 128>}, {transform_indices = @transform_5, window_bounds = array<i64: 16, 128>}]} {
    %c0_i32 = arith.constant 0 : i32
    %0 = arith.cmpi eq, %arg1, %c0_i32 : i32
    %1 = arith.extui %0 : i1 to i32
    %c0_i32_0 = arith.constant 0 : i32
    %2 = arith.cmpi ne, %1, %c0_i32_0 : i32
    scf.if %2 {
      %cst_13 = arith.constant 0.000000e+00 : f32
      %24 = vector.broadcast %cst_13 : f32 to vector<16x256xf32>
      %c0_14 = arith.constant 0 : index
      %c0_15 = arith.constant 0 : index
      %25 = vector.load %arg9[%c0_14, %c0_15] : memref<16x256xf32, #tpu.memory_space<vmem>>, vector<16x256xf32>
      tpu.vector_store %arg9[%c0_14, %c0_15], %24 {strides = array<i32>} : memref<16x256xf32, #tpu.memory_space<vmem>>, vector<16x256xf32>,
    } else {
    }
    %3 = arith.index_cast %arg1 : i32 to index
    %4 = memref.load %arg2[%3] : memref<5xf32, #tpu.memory_space<smem>>
    %c0 = arith.constant 0 : index
    %c0_1 = arith.constant 0 : index
    %c0_2 = arith.constant 0 : index
    %5 = vector.load %arg3[%c0, %c0_1, %c0_2] : memref<1x16x128xf32, #tpu.memory_space<vmem>>, vector<1x16x128xf32>
    %6 = vector.shape_cast %5 : vector<1x16x128xf32> to vector<16x128xf32>
    %7 = vector.broadcast %4 : f32 to vector<16x128xf32>
    %8 = arith.mulf %6, %7 : vector<16x128xf32>
    %c0_3 = arith.constant 0 : index
    %c0_4 = arith.constant 0 : index
    %9 = vector.load %arg4[%c0_3, %c0_4] : memref<128x256xf32, #tpu.memory_space<vmem>>, vector<128x256xf32>
    %cst = arith.constant dense<0.000000e+00> : vector<16x256xf32>
    %10 = tpu.matmul %8, %9, %cst {dimension_numbers = #tpu.dot_dimension_numbers<[1], [0], [0], [1], [0, 0, 1, 1], [], []>} : vector<16x128xf32>, vector<128x256xf32>, vector<16x256xf32> -> vector<16x256xf32>
    %c0_5 = arith.constant 0 : index
    %c0_6 = arith.constant 0 : index
    %11 = vector.load %arg5[%c0_5, %c0_6] : memref<1x256xf32, #tpu.memory_space<vmem>>, vector<1x256xf32>
    %12 = vector.broadcast %4 : f32 to vector<1x256xf32>
    %13 = arith.mulf %12, %11 : vector<1x256xf32>
    %14 = vector.broadcast %13 : vector<1x256xf32> to vector<16x256xf32>
    %15 = arith.addf %10, %14 : vector<16x256xf32>
    %cst_7 = arith.constant 0.000000e+00 : f32
    %16 = vector.broadcast %cst_7 : f32 to vector<16x256xf32>
    %17 = arith.maximumf %15, %16 : vector<16x256xf32>
    %c0_8 = arith.constant 0 : index
    %c0_9 = arith.constant 0 : index
    %18 = vector.load %arg9[%c0_8, %c0_9] : memref<16x256xf32, #tpu.memory_space<vmem>>, vector<16x256xf32>
    %19 = arith.addf %18, %17 : vector<16x256xf32>
    %c0_10 = arith.constant 0 : index
    %c0_11 = arith.constant 0 : index
    %20 = vector.load %arg9[%c0_10, %c0_11] : memref<16x256xf32, #tpu.memory_space<vmem>>, vector<16x256xf32>
    tpu.vector_store %arg9[%c0_10, %c0_11], %19 {strides = array<i32>} : memref<16x256xf32, #tpu.memory_space<vmem>>, vector<16x256xf32>,
    %c3_i32 = arith.constant 3 : i32
    %21 = arith.cmpi eq, %arg1, %c3_i32 : i32
    %22 = arith.extui %21 : i1 to i32
    %c0_i32_12 = arith.constant 0 : i32
    %23 = arith.cmpi ne, %22, %c0_i32_12 : i32
    scf.if %23 {
      %c0_13 = arith.constant 0 : index
      %c0_14 = arith.constant 0 : index
      %24 = vector.load %arg9[%c0_13, %c0_14] : memref<16x256xf32, #tpu.memory_space<vmem>>, vector<16x256xf32>
      %c0_15 = arith.constant 0 : index
      %c0_16 = arith.constant 0 : index
      %25 = vector.load %arg6[%c0_15, %c0_16] : memref<256x128xf32, #tpu.memory_space<vmem>>, vector<256x128xf32>
      %cst_17 = arith.constant dense<0.000000e+00> : vector<16x128xf32>
      %26 = tpu.matmul %24, %25, %cst_17 {dimension_numbers = #tpu.dot_dimension_numbers<[1], [0], [0], [1], [0, 0, 1, 1], [], []>} : vector<16x256xf32>, vector<256x128xf32>, vector<16x128xf32> -> vector<16x128xf32>
      %c4 = arith.constant 4 : index
      %27 = memref.load %arg2[%c4] : memref<5xf32, #tpu.memory_space<smem>>
      %c0_18 = arith.constant 0 : index
      %c0_19 = arith.constant 0 : index
      %28 = vector.load %arg7[%c0_18, %c0_19] : memref<1x128xf32, #tpu.memory_space<vmem>>, vector<1x128xf32>
      %29 = vector.broadcast %27 : f32 to vector<1x128xf32>
      %30 = arith.mulf %29, %28 : vector<1x128xf32>
      %31 = vector.broadcast %30 : vector<1x128xf32> to vector<16x128xf32>
      %32 = arith.addf %26, %31 : vector<16x128xf32>
      %c0_20 = arith.constant 0 : index
      %c0_21 = arith.constant 0 : index
      %33 = vector.load %arg8[%c0_20, %c0_21] : memref<16x128xf32, #tpu.memory_space<vmem>>, vector<16x128xf32>
      tpu.vector_store %arg8[%c0_20, %c0_21], %32 {strides = array<i32>} : memref<16x128xf32, #tpu.memory_space<vmem>>, vector<16x128xf32>,
    } else {
    }
    return
  }
  func.func @transform_0(%arg0: i32, %arg1: i32, %arg2: memref<5xf32, #tpu.memory_space<smem>>) -> (i32, i32, i32) {
    %c0_i32 = arith.constant 0 : i32
    %c0_i32_0 = arith.constant 0 : i32
    return %arg1, %arg0, %c0_i32 : i32, i32, i32
  }
  func.func @transform_1(%arg0: i32, %arg1: i32, %arg2: memref<5xf32, #tpu.memory_space<smem>>) -> (i32, i32) {
    %c0_i32 = arith.constant 0 : i32
    %c0_i32_0 = arith.constant 0 : i32
    %c0_i32_1 = arith.constant 0 : i32
    return %c0_i32, %c0_i32_0 : i32, i32
  }
  func.func @transform_2(%arg0: i32, %arg1: i32, %arg2: memref<5xf32, #tpu.memory_space<smem>>) -> (i32, i32) {
    %c0_i32 = arith.constant 0 : i32
    %c0_i32_0 = arith.constant 0 : i32
    %c0_i32_1 = arith.constant 0 : i32
    return %c0_i32, %c0_i32_0 : i32, i32
  }
  func.func @transform_3(%arg0: i32, %arg1: i32, %arg2: memref<5xf32, #tpu.memory_space<smem>>) -> (i32, i32) {
    %c0_i32 = arith.constant 0 : i32
    %c0_i32_0 = arith.constant 0 : i32
    %c0_i32_1 = arith.constant 0 : i32
    return %c0_i32, %c0_i32_0 : i32, i32
  }
  func.func @transform_4(%arg0: i32, %arg1: i32, %arg2: memref<5xf32, #tpu.memory_space<smem>>) -> (i32, i32) {
    %c0_i32 = arith.constant 0 : i32
    %c0_i32_0 = arith.constant 0 : i32
    %c0_i32_1 = arith.constant 0 : i32
    return %c0_i32, %c0_i32_0 : i32, i32
  }
  func.func @transform_5(%arg0: i32, %arg1: i32, %arg2: memref<5xf32, #tpu.memory_space<smem>>) -> (i32, i32) {
    %c0_i32 = arith.constant 0 : i32
    %c0_i32_0 = arith.constant 0 : i32
    return %arg0, %c0_i32 : i32, i32
  }
}

module attributes {stable_mosaic.version = 11 : i64} {
  func.func @kernel(%arg0: i32, %arg1: i32, %arg2: memref<5xf32, #tpu.memory_space<smem>>, %arg3: memref<1x16x128xf32, #tpu.memory_space<vmem>>, %arg4: memref<128x256xf32, #tpu.memory_space<vmem>>, %arg5: memref<1x256xf32, #tpu.memory_space<vmem>>, %arg6: memref<256x128xf32, #tpu.memory_space<vmem>>, %arg7: memref<1x128xf32, #tpu.memory_space<vmem>>, %arg8: memref<16x128xf32, #tpu.memory_space<vmem>>, %arg9: memref<16x256xf32, #tpu.memory_space<vmem>>) attributes {dimension_semantics = [#tpu.dimension_semantics<parallel>, #tpu.dimension_semantics<arbitrary>], iteration_bounds = array<i64: 2, 4>, scalar_prefetch = 1 : i64, scratch_operands = 1 : i64, tpu.core_type = #tpu.core_type<tc>, window_params = [{transform_indices = @transform_0, window_bounds = array<i64: 1, 16, 128>}, {pipeline_mode = #tpu.pipeline_mode<synchronous>, transform_indices = @transform_1, window_bounds = array<i64: 128, 256>}, {pipeline_mode = #tpu.pipeline_mode<synchronous>, transform_indices = @transform_2, window_bounds = array<i64: 1, 256>}, {pipeline_mode = #tpu.pipeline_mode<synchronous>, transform_indices = @transform_3, window_bounds = array<i64: 256, 128>}, {pipeline_mode = #tpu.pipeline_mode<synchronous>, transform_indices = @transform_4, window_bounds = array<i64: 1, 128>}, {transform_indices = @transform_5, window_bounds = array<i64: 16, 128>}]} {
    %c0_i32 = arith.constant 0 : i32
    %0 = arith.cmpi eq, %arg1, %c0_i32 : i32
    %1 = arith.extui %0 : i1 to i32
    %c0_i32_0 = arith.constant 0 : i32
    %2 = arith.cmpi ne, %1, %c0_i32_0 : i32
    scf.if %2 {
      %cst_13 = arith.constant 0.000000e+00 : f32
      %24 = vector.broadcast %cst_13 : f32 to vector<16x256xf32>
      %c0_14 = arith.constant 0 : index
      %c0_15 = arith.constant 0 : index
      %25 = vector.load %arg9[%c0_14, %c0_15] : memref<16x256xf32, #tpu.memory_space<vmem>>, vector<16x256xf32>
      tpu.vector_store %arg9[%c0_14, %c0_15], %24 {strides = array<i32>} : memref<16x256xf32, #tpu.memory_space<vmem>>, vector<16x256xf32>,
    } else {
    }
    %3 = arith.index_cast %arg1 : i32 to index
    %4 = memref.load %arg2[%3] : memref<5xf32, #tpu.memory_space<smem>>
    %c0 = arith.constant 0 : index
    %c0_1 = arith.constant 0 : index
    %c0_2 = arith.constant 0 : index
    %5 = vector.load %arg3[%c0, %c0_1, %c0_2] : memref<1x16x128xf32, #tpu.memory_space<vmem>>, vector<1x16x128xf32>
    %6 = vector.shape_cast %5 : vector<1x16x128xf32> to vector<16x128xf32>
    %7 = vector.broadcast %4 : f32 to vector<16x128xf32>
    %8 = arith.mulf %6, %7 : vector<16x128xf32>
    %c0_3 = arith.constant 0 : index
    %c0_4 = arith.constant 0 : index
    %9 = vector.load %arg4[%c0_3, %c0_4] : memref<128x256xf32, #tpu.memory_space<vmem>>, vector<128x256xf32>
    %cst = arith.constant dense<0.000000e+00> : vector<16x256xf32>
    %10 = tpu.matmul %8, %9, %cst {dimension_numbers = #tpu.dot_dimension_numbers<[1], [0], [0], [1], [0, 0, 1, 1], [], []>} : vector<16x128xf32>, vector<128x256xf32>, vector<16x256xf32> -> vector<16x256xf32>
    %c0_5 = arith.constant 0 : index
    %c0_6 = arith.constant 0 : index
    %11 = vector.load %arg5[%c0_5, %c0_6] : memref<1x256xf32, #tpu.memory_space<vmem>>, vector<1x256xf32>
    %12 = vector.broadcast %4 : f32 to vector<1x256xf32>
    %13 = arith.mulf %12, %11 : vector<1x256xf32>
    %14 = vector.broadcast %13 : vector<1x256xf32> to vector<16x256xf32>
    %15 = arith.addf %10, %14 : vector<16x256xf32>
    %cst_7 = arith.constant 0.000000e+00 : f32
    %16 = vector.broadcast %cst_7 : f32 to vector<16x256xf32>
    %17 = arith.maximumf %15, %16 : vector<16x256xf32>
    %c0_8 = arith.constant 0 : index
    %c0_9 = arith.constant 0 : index
    %18 = vector.load %arg9[%c0_8, %c0_9] : memref<16x256xf32, #tpu.memory_space<vmem>>, vector<16x256xf32>
    %19 = arith.addf %18, %17 : vector<16x256xf32>
    %c0_10 = arith.constant 0 : index
    %c0_11 = arith.constant 0 : index
    %20 = vector.load %arg9[%c0_10, %c0_11] : memref<16x256xf32, #tpu.memory_space<vmem>>, vector<16x256xf32>
    tpu.vector_store %arg9[%c0_10, %c0_11], %19 {strides = array<i32>} : memref<16x256xf32, #tpu.memory_space<vmem>>, vector<16x256xf32>,
    %c3_i32 = arith.constant 3 : i32
    %21 = arith.cmpi eq, %arg1, %c3_i32 : i32
    %22 = arith.extui %21 : i1 to i32
    %c0_i32_12 = arith.constant 0 : i32
    %23 = arith.cmpi ne, %22, %c0_i32_12 : i32
    scf.if %23 {
      %c0_13 = arith.constant 0 : index
      %c0_14 = arith.constant 0 : index
      %24 = vector.load %arg9[%c0_13, %c0_14] : memref<16x256xf32, #tpu.memory_space<vmem>>, vector<16x256xf32>
      %c0_15 = arith.constant 0 : index
      %c0_16 = arith.constant 0 : index
      %25 = vector.load %arg6[%c0_15, %c0_16] : memref<256x128xf32, #tpu.memory_space<vmem>>, vector<256x128xf32>
      %cst_17 = arith.constant dense<0.000000e+00> : vector<16x128xf32>
      %26 = tpu.matmul %24, %25, %cst_17 {dimension_numbers = #tpu.dot_dimension_numbers<[1], [0], [0], [1], [0, 0, 1, 1], [], []>} : vector<16x256xf32>, vector<256x128xf32>, vector<16x128xf32> -> vector<16x128xf32>
      %c4 = arith.constant 4 : index
      %27 = memref.load %arg2[%c4] : memref<5xf32, #tpu.memory_space<smem>>
      %c0_18 = arith.constant 0 : index
      %c0_19 = arith.constant 0 : index
      %28 = vector.load %arg7[%c0_18, %c0_19] : memref<1x128xf32, #tpu.memory_space<vmem>>, vector<1x128xf32>
      %29 = vector.broadcast %27 : f32 to vector<1x128xf32>
      %30 = arith.mulf %29, %28 : vector<1x128xf32>
      %31 = vector.broadcast %30 : vector<1x128xf32> to vector<16x128xf32>
      %32 = arith.addf %26, %31 : vector<16x128xf32>
      %c0_20 = arith.constant 0 : index
      %c0_21 = arith.constant 0 : index
      %33 = vector.load %arg8[%c0_20, %c0_21] : memref<16x128xf32, #tpu.memory_space<vmem>>, vector<16x128xf32>
      tpu.vector_store %arg8[%c0_20, %c0_21], %32 {strides = array<i32>} : memref<16x128xf32, #tpu.memory_space<vmem>>, vector<16x128xf32>,
    } else {
    }
    return
  }
  func.func @transform_0(%arg0: i32, %arg1: i32, %arg2: memref<5xf32, #tpu.memory_space<smem>>) -> (i32, i32, i32) {
    %c0_i32 = arith.constant 0 : i32
    %c0_i32_0 = arith.constant 0 : i32
    return %arg1, %arg0, %c0_i32 : i32, i32, i32
  }
  func.func @transform_1(%arg0: i32, %arg1: i32, %arg2: memref<5xf32, #tpu.memory_space<smem>>) -> (i32, i32) {
    %c0_i32 = arith.constant 0 : i32
    %c0_i32_0 = arith.constant 0 : i32
    %c0_i32_1 = arith.constant 0 : i32
    return %c0_i32, %c0_i32_0 : i32, i32
  }
  func.func @transform_2(%arg0: i32, %arg1: i32, %arg2: memref<5xf32, #tpu.memory_space<smem>>) -> (i32, i32) {
    %c0_i32 = arith.constant 0 : i32
    %c0_i32_0 = arith.constant 0 : i32
    %c0_i32_1 = arith.constant 0 : i32
    return %c0_i32, %c0_i32_0 : i32, i32
  }
  func.func @transform_3(%arg0: i32, %arg1: i32, %arg2: memref<5xf32, #tpu.memory_space<smem>>) -> (i32, i32) {
    %c0_i32 = arith.constant 0 : i32
    %c0_i32_0 = arith.constant 0 : i32
    %c0_i32_1 = arith.constant 0 : i32
    return %c0_i32, %c0_i32_0 : i32, i32
  }
  func.func @transform_4(%arg0: i32, %arg1: i32, %arg2: memref<5xf32, #tpu.memory_space<smem>>) -> (i32, i32) {
    %c0_i32 = arith.constant 0 : i32
    %c0_i32_0 = arith.constant 0 : i32
    %c0_i32_1 = arith.constant 0 : i32
    return %c0_i32, %c0_i32_0 : i32, i32
  }
  func.func @transform_5(%arg0: i32, %arg1: i32, %arg2: memref<5xf32, #tpu.memory_space<smem>>) -> (i32, i32) {
    %c0_i32 = arith.constant 0 : i32
    %c0_i32_0 = arith.constant 0 : i32
    return %arg0, %c0_i32 : i32, i32
  }
}

</mosaic_0001>

<llo_original>
// kernel: tpu_custom_call.1
$region0: #{tpu_custom_call.1}
  #allocation0 [shape = 'u32[]', space=smem, size = 0x4, offset = 0x4, fixed_abs, tag = 'smem constant byte address 0x4 - core index']
  #allocation1 [shape = 'u32[144,128]{1,0:T(1,128)}', space=vmem, size = 0x12000, scoped, tag = 'internal scratch']
  #allocation2 [shape = 'f32[16,256]{1,0:T(8,128)}', space=vmem, size = 0x4000, scoped, tag = 'scratch operand']
  #allocation3 [shape = 's32[1]{0}', space=sflag, size = 0x4, scoped, tag = 'scoped memory for tpu_custom_call.1']
  #allocation4 [shape = 'u8[512]{0}', space=smem, size = 0x200, scoped, tag = 'prefetched SMEM operand 0']
  %s0 = inlined_call_operand.hbm [shape: f32[5], index: 0, kind: input, shape index: {}]
  %s1 = inlined_call_operand.hbm [shape: f32[4,32,128], index: 1, kind: input, shape index: {}]
  %s2 = inlined_call_operand.hbm [shape: f32[128,256], index: 2, kind: input, shape index: {}]
  %s3 = inlined_call_operand.vmem [shape: f32[1,256], index: 3, kind: input, shape index: {}]
  %s4 = inlined_call_operand.hbm [shape: f32[256,128], index: 4, kind: input, shape index: {}]
  %s5 = inlined_call_operand.vmem [shape: f32[1,128], index: 5, kind: input, shape index: {}]
  %s6 = inlined_call_operand.hbm [shape: f32[32,128], index: 6, kind: output, shape index: {}]
  %s7 = sld [smem:[#allocation0]]
  $region73: #{tpu_custom_call.1} parent=0
    _
  %s9 = ssub.s32 1, %s7
  %s10 = scalar_select 0, %s9, %s7
  %12 = dma.hbm_to_smem %s0, 16, [#allocation4], [#allocation3]
  %13 = dma.done [#allocation3], 16
  %14 = sfence
  $region1: #{tpu_custom_call.1} parent=0
    #allocation5 [shape = 'u8[16384]{0}', space=vmem, size = 0x4000, scoped, tag = 'input window, operand 1']
    #allocation6 [shape = 's32[2]{0}', space=sflag, size = 0x8, scoped, tag = 'scoped memory for tpu_custom_call.1']
    #allocation7 [shape = 's32[2]{0}', space=sflag, size = 0x8, scoped, tag = 'scoped memory for tpu_custom_call.1']
    #allocation8 [shape = 'u8[131072]{0}', space=vmem, size = 0x20000, scoped, tag = 'input window, operand 2, single buffered']
    #allocation9 [shape = 's32[1]{0}', space=sflag, size = 0x4, scoped, tag = 'scoped memory for tpu_custom_call.1']
    #allocation10 [shape = 'u8[131072]{0}', space=vmem, size = 0x20000, scoped, tag = 'input window, operand 4, single buffered']
    #allocation11 [shape = 'u8[16384]{0}', space=vmem, size = 0x4000, scoped, tag = 'output window, operand 0']
    %15 = vsyncpa [#allocation6], 0
    %s16 = scalar_lea.sflag [#allocation6], 1
    %17 = vsyncpa %s16, 0
    %18 = vsyncpa [#allocation9], 0
    %19 = vsyncpa [#allocation7], 0
    %s20 = scalar_lea.sflag [#allocation7], 1
    %21 = vsyncpa %s20, 0
    loop: start=0, step=1, limit=10
    $region2: #{tpu_custom_call.1} parent=1 // loop_pre_header
      _
    $region3: #{tpu_custom_call.1} parent=1 // loop_header
      %s23 = sphi 0, %s27
      %p24 = scmp.ge.s32.totalorder %s23, 10
      %s30 = sphi 0, %s42
      %s31 = sphi 0, %s38
      %s32 = sphi 0, %s30
      %s33 = sphi 0, %s31
      %s34 = sphi 0, %s32
      %s35 = sphi 0, %s33
      %s47 = sphi 0, %s49
      %s50 = sphi 0, %s47
      %s51 = sphi 0, %s50
      %s67 = sphi 0, %s51
      %s71 = sphi 0, %s71
      %s73 = sphi 0, %s71
      %s74 = sphi 0, %s73
      %s88 = sphi 0, %s74
      %s92 = sphi 0, %s92
      %s94 = sphi 0, %s92
      %s95 = sphi 0, %s94
      %s109 = sphi 0, %s95
      %s113 = sphi 0, %s113
      %s115 = sphi 0, %s113
      %s116 = sphi 0, %s115
      %s130 = sphi 0, %s116
      %s134 = sphi 0, %s134
      %s136 = sphi 0, %s134
      %s137 = sphi 0, %s136
      %s151 = sphi 0, %s137
      %s157 = sphi 0, %s159
      %s160 = sphi 0, %s157
      %s161 = sphi 0, %s160
      %s177 = sphi 0, %s161
    $region4: #{tpu_custom_call.1} parent=1 // loop_header_branch
      %26 = sbr.rel (%p24) target = $region8
    $region5: #{tpu_custom_call.1} parent=1 // loop_body
      %s28 = ssub.s32 %s23, 1
      %s29 = ssub.s32 %s23, 2
      %s36 = sadd.s32 1, %s31
      %p37 = scmp.ge.s32.totalorder %s36, 4
      %s38 = scalar_select %p37, 0, %s36
      %s39 = sadd.s32 1, %s30
      %s40 = scalar_select %p37, %s39, %s30
      %p41 = scmp.ge.s32.totalorder %s40, 2
      %s42 = scalar_select %p41, 0, %s40
      %s43 = ssub.s32 %s31, %s38
      %s44 = ssub.s32 %s30, %s42
      %s45 = sor.u32 %s43, %s44
      %p46 = scmp.eq.s32.totalorder %s45, 0
      %s48 = sadd.s32 %s47, 1
      %s49 = scalar_select %p46, %s47, %s48
      %p52 = pneg %p46
      %p53 = scmp.eq.s32.totalorder %s23, 7
      %p54 = por %p52, %p53
      %p55 = scmp.ne.s32.totalorder %s47, %s50
      %p56 = scmp.eq.s32.totalorder %s23, 0
      %p57 = por %p55, %p56
      %p58 = scmp.ne.s32.totalorder %s47, %s50
      %p59 = scmp.eq.s32.totalorder %s28, 7
      %p60 = por %p58, %p59
      %p61 = scmp.ne.s32.totalorder %s50, %s51
      %p62 = scmp.eq.s32.totalorder %s28, 0
      %p63 = por %p61, %p62
      %p64 = scmp.ne.s32.totalorder %s50, %s51
      %p65 = scmp.eq.s32.totalorder %s29, 7
      %p66 = por %p64, %p65
      %p68 = scmp.ne.s32.totalorder %s51, %s67
      %p69 = scmp.eq.s32.totalorder %s29, 0
      %p70 = por %p68, %p69
      %s72 = sadd.s32 %s71, 1
      %p75 = scmp.eq.s32.totalorder %s23, 7
      %p76 = scmp.ne.s32.totalorder %s71, %s73
      %p77 = scmp.eq.s32.totalorder %s23, 0
      %p78 = por %p76, %p77
      %p79 = scmp.ne.s32.totalorder %s71, %s73
      %p80 = scmp.eq.s32.totalorder %s28, 7
      %p81 = por %p79, %p80
      %p82 = scmp.ne.s32.totalorder %s73, %s74
      %p83 = scmp.eq.s32.totalorder %s28, 0
      %p84 = por %p82, %p83
      %p85 = scmp.ne.s32.totalorder %s73, %s74
      %p86 = scmp.eq.s32.totalorder %s29, 7
      %p87 = por %p85, %p86
      %p89 = scmp.ne.s32.totalorder %s74, %s88
      %p90 = scmp.eq.s32.totalorder %s29, 0
      %p91 = por %p89, %p90
      %s93 = sadd.s32 %s92, 1
      %p96 = scmp.eq.s32.totalorder %s23, 7
      %p97 = scmp.ne.s32.totalorder %s92, %s94
      %p98 = scmp.eq.s32.totalorder %s23, 0
      %p99 = por %p97, %p98
      %p100 = scmp.ne.s32.totalorder %s92, %s94
      %p101 = scmp.eq.s32.totalorder %s28, 7
      %p102 = por %p100, %p101
      %p103 = scmp.ne.s32.totalorder %s94, %s95
      %p104 = scmp.eq.s32.totalorder %s28, 0
      %p105 = por %p103, %p104
      %p106 = scmp.ne.s32.totalorder %s94, %s95
      %p107 = scmp.eq.s32.totalorder %s29, 7
      %p108 = por %p106, %p107
      %p110 = scmp.ne.s32.totalorder %s95, %s109
      %p111 = scmp.eq.s32.totalorder %s29, 0
      %p112 = por %p110, %p111
      %s114 = sadd.s32 %s113, 1
      %p117 = scmp.eq.s32.totalorder %s23, 7
      %p118 = scmp.ne.s32.totalorder %s113, %s115
      %p119 = scmp.eq.s32.totalorder %s23, 0
      %p120 = por %p118, %p119
      %p121 = scmp.ne.s32.totalorder %s113, %s115
      %p122 = scmp.eq.s32.totalorder %s28, 7
      %p123 = por %p121, %p122
      %p124 = scmp.ne.s32.totalorder %s115, %s116
      %p125 = scmp.eq.s32.totalorder %s28, 0
      %p126 = por %p124, %p125
      %p127 = scmp.ne.s32.totalorder %s115, %s116
      %p128 = scmp.eq.s32.totalorder %s29, 7
      %p129 = por %p127, %p128
      %p131 = scmp.ne.s32.totalorder %s116, %s130
      %p132 = scmp.eq.s32.totalorder %s29, 0
      %p133 = por %p131, %p132
      %s135 = sadd.s32 %s134, 1
      %p138 = scmp.eq.s32.totalorder %s23, 7
      %p139 = scmp.ne.s32.totalorder %s134, %s136
      %p140 = scmp.eq.s32.totalorder %s23, 0
      %p141 = por %p139, %p140
      %p142 = scmp.ne.s32.totalorder %s134, %s136
      %p143 = scmp.eq.s32.totalorder %s28, 7
      %p144 = por %p142, %p143
      %p145 = scmp.ne.s32.totalorder %s136, %s137
      %p146 = scmp.eq.s32.totalorder %s28, 0
      %p147 = por %p145, %p146
      %p148 = scmp.ne.s32.totalorder %s136, %s137
      %p149 = scmp.eq.s32.totalorder %s29, 7
      %p150 = por %p148, %p149
      %p152 = scmp.ne.s32.totalorder %s137, %s151
      %p153 = scmp.eq.s32.totalorder %s29, 0
      %p154 = por %p152, %p153
      %s155 = ssub.s32 %s30, %s42
      %p156 = scmp.eq.s32.totalorder %s155, 0
      %s158 = sadd.s32 %s157, 1
      %s159 = scalar_select %p156, %s157, %s158
      %p162 = pneg %p156
      %p163 = scmp.eq.s32.totalorder %s23, 7
      %p164 = por %p162, %p163
      %p165 = scmp.ne.s32.totalorder %s157, %s160
      %p166 = scmp.eq.s32.totalorder %s23, 0
      %p167 = por %p165, %p166
      %p168 = scmp.ne.s32.totalorder %s157, %s160
      %p169 = scmp.eq.s32.totalorder %s28, 7
      %p170 = por %p168, %p169
      %p171 = scmp.ne.s32.totalorder %s160, %s161
      %p172 = scmp.eq.s32.totalorder %s28, 0
      %p173 = por %p171, %p172
      %p174 = scmp.ne.s32.totalorder %s160, %s161
      %p175 = scmp.eq.s32.totalorder %s29, 7
      %p176 = por %p174, %p175
      %p178 = scmp.ne.s32.totalorder %s161, %s177
      %p179 = scmp.eq.s32.totalorder %s29, 0
      %p180 = por %p178, %p179
      %p181 = scmp.le.s32.totalorder 1, %s23
      %p182 = scmp.lt.s32.totalorder %s23, 9
      %p183 = pnand %p181, %p182
      %p184 = pneg %p183
      // Predicated region
      $region9: #{tpu_custom_call.1} parent=5 // pred_check
        _
      $region10: #{tpu_custom_call.1} parent=5 // pred_check_branch
        %186 = sbr.rel (%p183) target = $region12
      $region11: #{tpu_custom_call.1} parent=5 // pred_region
        %s187 = ssub.s32 %s23, 1
        // Predicated region
        $region13: #{tpu_custom_call.1} parent=11 // pred_check
          %p188 = pneg %p84
        $region14: #{tpu_custom_call.1} parent=11 // pred_check_branch
          %190 = sbr.rel (%p188) target = $region16
        $region15: #{tpu_custom_call.1} parent=11 // pred_region
          %s192 = ssub.s32 4096, 4096
          %193 = vsyncadd [#allocation9], %s192
          %s194 = sshll.u32 [#allocation8], 4
          %s195 = int_to_ptr.vmem [resolvable:$true] %s194
          %200 = dma.hbm_to_vmem [thread:$0]  %s2, 4096, %s195, [#allocation9], 256, 256, 16
        $region16: #{tpu_custom_call.1} parent=11 // pred_fallthru
          _
        // Predicated region
        $region17: #{tpu_custom_call.1} parent=11 // pred_check
          %p201 = pneg %p105
        $region18: #{tpu_custom_call.1} parent=11 // pred_check_branch
          %203 = sbr.rel (%p201) target = $region20
        $region19: #{tpu_custom_call.1} parent=11 // pred_region
          _
        $region20: #{tpu_custom_call.1} parent=11 // pred_fallthru
          _
        // Predicated region
        $region21: #{tpu_custom_call.1} parent=11 // pred_check
          %p204 = pneg %p126
        $region22: #{tpu_custom_call.1} parent=11 // pred_check_branch
          %206 = sbr.rel (%p204) target = $region24
        $region23: #{tpu_custom_call.1} parent=11 // pred_region
          %s208 = ssub.s32 4096, 4096
          %209 = vsyncadd [#allocation9], %s208
          %s210 = sshll.u32 [#allocation10], 4
          %s211 = int_to_ptr.vmem [resolvable:$true] %s210
          %216 = dma.hbm_to_vmem [thread:$0]  %s4, 4096, %s211, [#allocation9], 128, 128, 8
        $region24: #{tpu_custom_call.1} parent=11 // pred_fallthru
          _
        // Predicated region
        $region25: #{tpu_custom_call.1} parent=11 // pred_check
          %p217 = pneg %p147
        $region26: #{tpu_custom_call.1} parent=11 // pred_check_branch
          %219 = sbr.rel (%p217) target = $region28
        $region27: #{tpu_custom_call.1} parent=11 // pred_region
          _
        $region28: #{tpu_custom_call.1} parent=11 // pred_fallthru
          _
      $region12: #{tpu_custom_call.1} parent=5 // pred_fallthru
        _
      %p220 = scmp.lt.s32.totalorder %s23, 8
      // Predicated region
      $region29: #{tpu_custom_call.1} parent=5 // pred_check
        %p221 = pneg %p220
      $region30: #{tpu_custom_call.1} parent=5 // pred_check_branch
        %223 = sbr.rel (%p221) target = $region32
      $region31: #{tpu_custom_call.1} parent=5 // pred_region
        // Predicated region
        $region33: #{tpu_custom_call.1} parent=31 // pred_check
          %p224 = pneg %p57
        $region34: #{tpu_custom_call.1} parent=31 // pred_check_branch
          %226 = sbr.rel (%p224) target = $region36
        $region35: #{tpu_custom_call.1} parent=31 // pred_region
          %s227 = sand.u32 %s47, 1
          %s228 = scalar_lea.sflag [#allocation6], %s227
          %s229 = sand.u32 %s47, 1
          %s230 = smul.addr %s229, 16
          %s231 = scalar_lea.vmem [#allocation5], %s230
          %s232 = smul.u32 2, %s30
          %s234 = ssub.s32 256, 256
          %235 = vsyncadd %s228, %s234
          %s236 = smul.addr %s31, 4
          %s237 = sadd.s32 %s232, %s236
          %s238 = smul.addr %s237, 128
          %s239 = scalar_lea.hbm %s1, %s238
          %s240 = sshll.u32 %s231, 4
          %s241 = int_to_ptr.vmem [resolvable:$true] %s240
          %246 = dma.hbm_to_vmem [thread:$0]  %s239, 256, %s241, %s228, 128, 128, 8
        $region36: #{tpu_custom_call.1} parent=31 // pred_fallthru
          _
      $region32: #{tpu_custom_call.1} parent=5 // pred_fallthru
        _
      %p247 = scmp.le.s32.totalorder 1, %s23
      %p248 = scmp.lt.s32.totalorder %s23, 9
      %p249 = pnand %p247, %p248
      %p250 = pneg %p249
      // Predicated region
      $region37: #{tpu_custom_call.1} parent=5 // pred_check
        _
      $region38: #{tpu_custom_call.1} parent=5 // pred_check_branch
        %252 = sbr.rel (%p249) target = $region40
      $region39: #{tpu_custom_call.1} parent=5 // pred_region
        %s253 = ssub.s32 %s23, 1
        %s254 = sand.u32 %s50, 1
        %s255 = scalar_lea.sflag [#allocation6], %s254
        %s256 = sand.u32 %s50, 1
        %s257 = smul.addr %s256, 16
        %s258 = scalar_lea.vmem [#allocation5], %s257
        // Predicated region
        $region41: #{tpu_custom_call.1} parent=39 // pred_check
          %p259 = pneg %p63
        $region42: #{tpu_custom_call.1} parent=39 // pred_check_branch
          %261 = sbr.rel (%p259) target = $region44
        $region43: #{tpu_custom_call.1} parent=39 // pred_region
          %262 = dma.done %s255, 256
        $region44: #{tpu_custom_call.1} parent=39 // pred_fallthru
          _
        // Predicated region
        $region45: #{tpu_custom_call.1} parent=39 // pred_check
          %p263 = pneg %p84
        $region46: #{tpu_custom_call.1} parent=39 // pred_check_branch
          %265 = sbr.rel (%p263) target = $region48
        $region47: #{tpu_custom_call.1} parent=39 // pred_region
          %266 = dma.done [#allocation9], 4096
        $region48: #{tpu_custom_call.1} parent=39 // pred_fallthru
          _
        // Predicated region
        $region49: #{tpu_custom_call.1} parent=39 // pred_check
          %p267 = pneg %p126
        $region50: #{tpu_custom_call.1} parent=39 // pred_check_branch
          %269 = sbr.rel (%p267) target = $region52
        $region51: #{tpu_custom_call.1} parent=39 // pred_region
          %270 = dma.done [#allocation9], 4096
        $region52: #{tpu_custom_call.1} parent=39 // pred_fallthru
          _
        %s271 = sand.u32 %s50, 1
        %s272 = scalar_lea.sflag [#allocation6], %s271
        %s273 = sand.u32 %s50, 1
        %s274 = smul.addr %s273, 16
        %s275 = scalar_lea.vmem [#allocation5], %s274
        %p276 = pneg %p63
        %p277 = pneg %p60
        %p278 = pneg %p84
        %p279 = pneg %p81
        %p280 = pneg %p105
        %p281 = pneg %p102
        %p282 = pneg %p126
        %p283 = pneg %p123
        %p284 = pneg %p147
        %p285 = pneg %p144
        %p286 = pneg %p173
        %p287 = pneg %p170
        %s288 = sand.u32 %s160, 1
        %s289 = scalar_lea.sflag [#allocation7], %s288
        %s290 = sand.u32 %s160, 1
        %s291 = smul.addr %s290, 16
        %s292 = scalar_lea.vmem [#allocation11], %s291
        %s293 = smul.u32 2, %s32
        %s294 = smul.u32 2, %s32
        %p295 = scmp.eq.s32.totalorder %s33, 0
        // Predicated region
        $region53: #{tpu_custom_call.1} parent=39 // pred_check
          %p296 = pneg %p295
        $region54: #{tpu_custom_call.1} parent=39 // pred_check_branch
          %298 = sbr.rel (%p296) target = $region56
        $region55: #{tpu_custom_call.1} parent=39 // pred_region
          %299 = vst [vmem:[#allocation2] sm:$0xff] 0.0
          %300 = vst [vmem:[#allocation2 + $0x8] sm:$0xff] 0.0
          %301 = vst [vmem:[#allocation2 + $0x10] sm:$0xff] 0.0
          %302 = vst [vmem:[#allocation2 + $0x18] sm:$0xff] 0.0
        $region56: #{tpu_custom_call.1} parent=39 // pred_fallthru
          _
        %s303 = sld [smem:[#allocation4 + %s33]]
        %v304 = vld [vmem:[%s258] sm:$0xff]
        %v305 = vld [vmem:[%s258 + $0x8] sm:$0xff]
        %v306 = vstv %s303
        %v307 = vmul.f32 %v304, %v306
        %v308 = vmul.f32 %v305, %v306
        %v309 = vld [vmem:[#allocation8] sm:$0xff]
        %v310 = vld [vmem:[#allocation8 + $0x8] sm:$0xff]
        %v311 = vld [vmem:[#allocation8 + $0x10] sm:$0xff]
        %v312 = vld [vmem:[#allocation8 + $0x18] sm:$0xff]
        %v313 = vld [vmem:[#allocation8 + $0x20] sm:$0xff]
        %v314 = vld [vmem:[#allocation8 + $0x28] sm:$0xff]
        %v315 = vld [vmem:[#allocation8 + $0x30] sm:$0xff]
        %v316 = vld [vmem:[#allocation8 + $0x38] sm:$0xff]
        %v317 = vld [vmem:[#allocation8 + $0x40] sm:$0xff]
        %v318 = vld [vmem:[#allocation8 + $0x48] sm:$0xff]
        %v319 = vld [vmem:[#allocation8 + $0x50] sm:$0xff]
        %v320 = vld [vmem:[#allocation8 + $0x58] sm:$0xff]
        %v321 = vld [vmem:[#allocation8 + $0x60] sm:$0xff]
        %v322 = vld [vmem:[#allocation8 + $0x68] sm:$0xff]
        %v323 = vld [vmem:[#allocation8 + $0x70] sm:$0xff]
        %v324 = vld [vmem:[#allocation8 + $0x78] sm:$0xff]
        %v325 = vld [vmem:[#allocation8 + $0x80] sm:$0xff]
        %v326 = vld [vmem:[#allocation8 + $0x88] sm:$0xff]
        %v327 = vld [vmem:[#allocation8 + $0x90] sm:$0xff]
        %v328 = vld [vmem:[#allocation8 + $0x98] sm:$0xff]
        %v329 = vld [vmem:[#allocation8 + $0xa0] sm:$0xff]
        %v330 = vld [vmem:[#allocation8 + $0xa8] sm:$0xff]
        %v331 = vld [vmem:[#allocation8 + $0xb0] sm:$0xff]
        %v332 = vld [vmem:[#allocation8 + $0xb8] sm:$0xff]
        %v333 = vld [vmem:[#allocation8 + $0xc0] sm:$0xff]
        %v334 = vld [vmem:[#allocation8 + $0xc8] sm:$0xff]
        %v335 = vld [vmem:[#allocation8 + $0xd0] sm:$0xff]
        %v336 = vld [vmem:[#allocation8 + $0xd8] sm:$0xff]
        %v337 = vld [vmem:[#allocation8 + $0xe0] sm:$0xff]
        %v338 = vld [vmem:[#allocation8 + $0xe8] sm:$0xff]
        %v339 = vld [vmem:[#allocation8 + $0xf0] sm:$0xff]
        %v340 = vld [vmem:[#allocation8 + $0xf8] sm:$0xff]
        %v341 = vld [vmem:[%s3] sm:$0x3]
        %v342 = vmul.f32 %v306, %v341
        %v344 = vlaneseq
        %v345 = vshrl.u32 %v344, 7
        %v346 = vsub.s32 0, %v345
        %v347 = vrot.slane %v342, %v346
        %v348 = vlaneseq
        %v349 = vshrl.u32 %v348, 7
        %v350 = vsub.s32 1, %v349
        %v351 = vrot.slane %v342, %v350
        %354 = vmatprep.subr.mxu0 %v310
        %355 = vmatpush1.msra.mxu0 %v309
        %356 = vmatprep.subr.mxu0 %v312
        %357 = vmatpush1.msra.mxu0 %v311
        %358 = vmatprep.subr.mxu0 %v314
        %359 = vmatpush1.msra.mxu0 %v313
        %360 = vmatprep.subr.mxu0 %v316
        %361 = vmatpush1.msra.mxu0 %v315
        %362 = vmatprep.subr.mxu0 %v318
        %363 = vmatpush1.msra.mxu0 %v317
        %364 = vmatprep.subr.mxu0 %v320
        %365 = vmatpush1.msra.mxu0 %v319
        %366 = vmatprep.subr.mxu0 %v322
        %367 = vmatpush1.msra.mxu0 %v321
        %368 = vmatprep.subr.mxu0 %v324
        %369 = vmatpush1.msra.mxu0 %v323
        %370 = vmatprep.subr.mxu0 %v326
        %371 = vmatpush1.msra.mxu0 %v325
        %372 = vmatprep.subr.mxu0 %v328
        %373 = vmatpush1.msra.mxu0 %v327
        %374 = vmatprep.subr.mxu0 %v330
        %375 = vmatpush1.msra.mxu0 %v329
        %376 = vmatprep.subr.mxu0 %v332
        %377 = vmatpush1.msra.mxu0 %v331
        %378 = vmatprep.subr.mxu0 %v334
        %379 = vmatpush1.msra.mxu0 %v333
        %380 = vmatprep.subr.mxu0 %v336
        %381 = vmatpush1.msra.mxu0 %v335
        %382 = vmatprep.subr.mxu0 %v338
        %383 = vmatpush1.msra.mxu0 %v337
        %384 = vmatprep.subr.mxu0 %v340
        %385 = vmatpush1.msra.mxu0 %v339
        %386 = vmatprep.subr.mxu0 0.0
        %387 = vmatpush1.msra.mxu0 0.0
        %388 = vmatprep.subr.mxu0 0.0
        %389 = vmatpush1.msra.mxu0 0.0
        %390 = vmatprep.subr.mxu0 0.0
        %391 = vmatpush1.msra.mxu0 0.0
        %392 = vmatprep.subr.mxu0 0.0
        %393 = vmatpush1.msra.mxu0 0.0
        %394 = vmatprep.subr.mxu0 0.0
        %395 = vmatpush1.msra.mxu0 0.0
        %396 = vmatprep.subr.mxu0 0.0
        %397 = vmatpush1.msra.mxu0 0.0
        %398 = vmatprep.subr.mxu0 0.0
        %399 = vmatpush1.msra.mxu0 0.0
        %400 = vmatprep.subr.mxu0 0.0
        %401 = vmatpush1.msra.mxu0 0.0
        %402 = vmatprep.subr.mxu0 0.0
        %403 = vmatpush1.msra.mxu0 0.0
        %404 = vmatprep.subr.mxu0 0.0
        %405 = vmatpush1.msra.mxu0 0.0
        %406 = vmatprep.subr.mxu0 0.0
        %407 = vmatpush1.msra.mxu0 0.0
        %408 = vmatprep.subr.mxu0 0.0
        %409 = vmatpush1.msra.mxu0 0.0
        %410 = vmatprep.subr.mxu0 0.0
        %411 = vmatpush1.msra.mxu0 0.0
        %412 = vmatprep.subr.mxu0 0.0
        %413 = vmatpush1.msra.mxu0 0.0
        %414 = vmatprep.subr.mxu0 0.0
        %415 = vmatpush1.msra.mxu0 0.0
        %416 = vmatprep.subr.mxu0 0.0
        %417 = vmatpush1.msra.mxu0 0.0
        %418 = vmatprep.mubr.f32.mxu0 0.0
        %419 = vmatmul.mubr.f32.gmra.mrb[0].mxu0 %v307
        %v420 = vpop.f32.mrb[0].mxu0
        %v421 = vadd.f32 %v347, %v420
        %v422 = vpop.f32.mrb[0].mxu0
        %v423 = vadd.f32 %v351, %v422
        %424 = vmatprep.mubr.f32.mxu0 0.0
        %425 = vmatmul.mubr.f32.gmra.mrb[0].mxu0 %v308
        %v426 = vpop.f32.mrb[0].mxu0
        %v427 = vadd.f32 %v347, %v426
        %v428 = vpop.f32.mrb[0].mxu0
        %v429 = vadd.f32 %v351, %v428
        %430 = vdwg.mxu0
        %v431 = vmax.f32 %v421, 0.0
        %v432 = vmax.f32 %v423, 0.0
        %v433 = vmax.f32 %v427, 0.0
        %v434 = vmax.f32 %v429, 0.0
        %v435 = vld [vmem:[#allocation2] sm:$0xff]
        %v436 = vld [vmem:[#allocation2 + $0x8] sm:$0xff]
        %v437 = vld [vmem:[#allocation2 + $0x10] sm:$0xff]
        %v438 = vld [vmem:[#allocation2 + $0x18] sm:$0xff]
        %v439 = vadd.f32 %v435, %v431
        %v440 = vadd.f32 %v436, %v432
        %v441 = vadd.f32 %v437, %v433
        %v442 = vadd.f32 %v438, %v434
        %443 = vst [vmem:[#allocation2] sm:$0xff] %v439
        %444 = vst [vmem:[#allocation2 + $0x8] sm:$0xff] %v440
        %445 = vst [vmem:[#allocation2 + $0x10] sm:$0xff] %v441
        %446 = vst [vmem:[#allocation2 + $0x18] sm:$0xff] %v442
        %p447 = scmp.eq.s32.totalorder %s33, 3
        // Predicated region
        $region57: #{tpu_custom_call.1} parent=39 // pred_check
          %p448 = pneg %p447
        $region58: #{tpu_custom_call.1} parent=39 // pred_check_branch
          %450 = sbr.rel (%p448) target = $region60
        $region59: #{tpu_custom_call.1} parent=39 // pred_region
          %v451 = vld [vmem:[#allocation2] sm:$0xff]
          %v452 = vld [vmem:[#allocation2 + $0x8] sm:$0xff]
          %v453 = vld [vmem:[#allocation2 + $0x10] sm:$0xff]
          %v454 = vld [vmem:[#allocation2 + $0x18] sm:$0xff]
          %v455 = vld [vmem:[#allocation10] sm:$0xff]
          %v456 = vld [vmem:[#allocation10 + $0x8] sm:$0xff]
          %v457 = vld [vmem:[#allocation10 + $0x10] sm:$0xff]
          %v458 = vld [vmem:[#allocation10 + $0x18] sm:$0xff]
          %v459 = vld [vmem:[#allocation10 + $0x20] sm:$0xff]
          %v460 = vld [vmem:[#allocation10 + $0x28] sm:$0xff]
          %v461 = vld [vmem:[#allocation10 + $0x30] sm:$0xff]
          %v462 = vld [vmem:[#allocation10 + $0x38] sm:$0xff]
          %v463 = vld [vmem:[#allocation10 + $0x40] sm:$0xff]
          %v464 = vld [vmem:[#allocation10 + $0x48] sm:$0xff]
          %v465 = vld [vmem:[#allocation10 + $0x50] sm:$0xff]
          %v466 = vld [vmem:[#allocation10 + $0x58] sm:$0xff]
          %v467 = vld [vmem:[#allocation10 + $0x60] sm:$0xff]
          %v468 = vld [vmem:[#allocation10 + $0x68] sm:$0xff]
          %v469 = vld [vmem:[#allocation10 + $0x70] sm:$0xff]
          %v470 = vld [vmem:[#allocation10 + $0x78] sm:$0xff]
          %v471 = vld [vmem:[#allocation10 + $0x80] sm:$0xff]
          %v472 = vld [vmem:[#allocation10 + $0x88] sm:$0xff]
          %v473 = vld [vmem:[#allocation10 + $0x90] sm:$0xff]
          %v474 = vld [vmem:[#allocation10 + $0x98] sm:$0xff]
          %v475 = vld [vmem:[#allocation10 + $0xa0] sm:$0xff]
          %v476 = vld [vmem:[#allocation10 + $0xa8] sm:$0xff]
          %v477 = vld [vmem:[#allocation10 + $0xb0] sm:$0xff]
          %v478 = vld [vmem:[#allocation10 + $0xb8] sm:$0xff]
          %v479 = vld [vmem:[#allocation10 + $0xc0] sm:$0xff]
          %v480 = vld [vmem:[#allocation10 + $0xc8] sm:$0xff]
          %v481 = vld [vmem:[#allocation10 + $0xd0] sm:$0xff]
          %v482 = vld [vmem:[#allocation10 + $0xd8] sm:$0xff]
          %v483 = vld [vmem:[#allocation10 + $0xe0] sm:$0xff]
          %v484 = vld [vmem:[#allocation10 + $0xe8] sm:$0xff]
          %v485 = vld [vmem:[#allocation10 + $0xf0] sm:$0xff]
          %v486 = vld [vmem:[#allocation10 + $0xf8] sm:$0xff]
          %s487 = sld [smem:[#allocation4 + $0x4]]
          %v488 = vld [vmem:[%s5] sm:$0x1]
          %v489 = vstv %s487
          %v490 = vmul.f32 %v489, %v488
          %v492 = vlaneseq
          %v493 = vshrl.u32 %v492, 7
          %v494 = vsub.s32 0, %v493
          %v495 = vrot.slane %v490, %v494
          %497 = vmatprep.subr.mxu0 0.0
          %498 = vmatpush1.msra.mxu0 %v455
          %499 = vmatprep.subr.mxu0 0.0
          %500 = vmatpush1.msra.mxu0 %v456
          %501 = vmatprep.subr.mxu0 0.0
          %502 = vmatpush1.msra.mxu0 %v457
          %503 = vmatprep.subr.mxu0 0.0
          %504 = vmatpush1.msra.mxu0 %v458
          %505 = vmatprep.subr.mxu0 0.0
          %506 = vmatpush1.msra.mxu0 %v459
          %507 = vmatprep.subr.mxu0 0.0
          %508 = vmatpush1.msra.mxu0 %v460
          %509 = vmatprep.subr.mxu0 0.0
          %510 = vmatpush1.msra.mxu0 %v461
          %511 = vmatprep.subr.mxu0 0.0
          %512 = vmatpush1.msra.mxu0 %v462
          %513 = vmatprep.subr.mxu0 0.0
          %514 = vmatpush1.msra.mxu0 %v463
          %515 = vmatprep.subr.mxu0 0.0
          %516 = vmatpush1.msra.mxu0 %v464
          %517 = vmatprep.subr.mxu0 0.0
          %518 = vmatpush1.msra.mxu0 %v465
          %519 = vmatprep.subr.mxu0 0.0
          %520 = vmatpush1.msra.mxu0 %v466
          %521 = vmatprep.subr.mxu0 0.0
          %522 = vmatpush1.msra.mxu0 %v467
          %523 = vmatprep.subr.mxu0 0.0
          %524 = vmatpush1.msra.mxu0 %v468
          %525 = vmatprep.subr.mxu0 0.0
          %526 = vmatpush1.msra.mxu0 %v469
          %527 = vmatprep.subr.mxu0 0.0
          %528 = vmatpush1.msra.mxu0 %v470
          %529 = vmatprep.subr.mxu0 0.0
          %530 = vmatpush1.msra.mxu0 %v471
          %531 = vmatprep.subr.mxu0 0.0
          %532 = vmatpush1.msra.mxu0 %v472
          %533 = vmatprep.subr.mxu0 0.0
          %534 = vmatpush1.msra.mxu0 %v473
          %535 = vmatprep.subr.mxu0 0.0
          %536 = vmatpush1.msra.mxu0 %v474
          %537 = vmatprep.subr.mxu0 0.0
          %538 = vmatpush1.msra.mxu0 %v475
          %539 = vmatprep.subr.mxu0 0.0
          %540 = vmatpush1.msra.mxu0 %v476
          %541 = vmatprep.subr.mxu0 0.0
          %542 = vmatpush1.msra.mxu0 %v477
          %543 = vmatprep.subr.mxu0 0.0
          %544 = vmatpush1.msra.mxu0 %v478
          %545 = vmatprep.subr.mxu0 0.0
          %546 = vmatpush1.msra.mxu0 %v479
          %547 = vmatprep.subr.mxu0 0.0
          %548 = vmatpush1.msra.mxu0 %v480
          %549 = vmatprep.subr.mxu0 0.0
          %550 = vmatpush1.msra.mxu0 %v481
          %551 = vmatprep.subr.mxu0 0.0
          %552 = vmatpush1.msra.mxu0 %v482
          %553 = vmatprep.subr.mxu0 0.0
          %554 = vmatpush1.msra.mxu0 %v483
          %555 = vmatprep.subr.mxu0 0.0
          %556 = vmatpush1.msra.mxu0 %v484
          %557 = vmatprep.subr.mxu0 0.0
          %558 = vmatpush1.msra.mxu0 %v485
          %559 = vmatprep.subr.mxu0 0.0
          %560 = vmatpush1.msra.mxu0 %v486
          %561 = vmatprep.mubr.f32.mxu0 %v452
          %562 = vmatmul.mubr.f32.gmra.mrb[0].mxu0 %v451
          %v563 = vpop.f32.mrb[0].mxu0
          %v564 = vadd.f32 %v495, %v563
          %v565 = vpop.f32.mrb[0].mxu0
          %566 = vmatprep.mubr.f32.mxu0 %v454
          %567 = vmatmul.mubr.f32.gmra.mrb[0].mxu0 %v453
          %v568 = vpop.f32.mrb[0].mxu0
          %v569 = vadd.f32 %v495, %v568
          %v570 = vpop.f32.mrb[0].mxu0
          %571 = vdwg.mxu0
          %572 = vst [vmem:[%s292] sm:$0xff] %v564
          %573 = vst [vmem:[%s292 + $0x8] sm:$0xff] %v569
        $region60: #{tpu_custom_call.1} parent=39 // pred_fallthru
          _
        %s574 = sand.u32 %s160, 1
        %s575 = scalar_lea.sflag [#allocation7], %s574
        %s576 = sand.u32 %s160, 1
        %s577 = smul.addr %s576, 16
        %s578 = scalar_lea.vmem [#allocation11], %s577
        // Predicated region
        $region61: #{tpu_custom_call.1} parent=39 // pred_check
          %p579 = pneg %p170
        $region62: #{tpu_custom_call.1} parent=39 // pred_check_branch
          %581 = sbr.rel (%p579) target = $region64
        $region63: #{tpu_custom_call.1} parent=39 // pred_region
          %s582 = smul.u32 2, %s32
          %s584 = ssub.s32 256, 256
          %585 = vsyncadd %s575, %s584
          %s586 = smul.addr %s582, 128
          %s587 = scalar_lea.hbm %s6, %s586
          %s588 = sshll.u32 %s578, 4
          %s589 = int_to_ptr.vmem [resolvable:$true] %s588
          %594 = dma.vmem_to_hbm [thread:$0]  %s589, 256, %s587, %s575, 128, 128, 8
        $region64: #{tpu_custom_call.1} parent=39 // pred_fallthru
          _
      $region40: #{tpu_custom_call.1} parent=5 // pred_fallthru
        _
      %p595 = scmp.le.s32.totalorder 2, %s23
      // Predicated region
      $region65: #{tpu_custom_call.1} parent=5 // pred_check
        %p596 = pneg %p595
      $region66: #{tpu_custom_call.1} parent=5 // pred_check_branch
        %598 = sbr.rel (%p596) target = $region68
      $region67: #{tpu_custom_call.1} parent=5 // pred_region
        %s599 = ssub.s32 %s23, 2
        // Predicated region
        $region69: #{tpu_custom_call.1} parent=67 // pred_check
          %p600 = pneg %p176
        $region70: #{tpu_custom_call.1} parent=67 // pred_check_branch
          %602 = sbr.rel (%p600) target = $region72
        $region71: #{tpu_custom_call.1} parent=67 // pred_region
          %s603 = sand.u32 %s161, 1
          %s604 = scalar_lea.sflag [#allocation7], %s603
          %s605 = sand.u32 %s161, 1
          %s606 = smul.addr %s605, 16
          %s607 = scalar_lea.vmem [#allocation11], %s606
          %608 = dma.done %s604, 256
        $region72: #{tpu_custom_call.1} parent=67 // pred_fallthru
          _
      $region68: #{tpu_custom_call.1} parent=5 // pred_fallthru
        _
    $region6: #{tpu_custom_call.1} parent=1 // loop_footer
      %s27 = sadd.s32 1, %s23
    $region7: #{tpu_custom_call.1} parent=1 // loop_footer_branch
      %22 = sbr.rel target = $region3
    $region8: #{tpu_custom_call.1} parent=1 // loop_exit
      _
    %609 = vsyncpa [#allocation6], 1
    %s610 = scalar_lea.sflag [#allocation6], 1
    %611 = vsyncpa %s610, 1
    %612 = vsyncpa [#allocation9], 1
    %613 = vsyncpa [#allocation7], 1
    %s614 = scalar_lea.sflag [#allocation7], 1
    %615 = vsyncpa %s614, 1

// kernel: tpu_custom_call.1
$region0: #{tpu_custom_call.1}
  #allocation0 [shape = 'u32[]', space=smem, size = 0x4, offset = 0x4, fixed_abs, tag = 'smem constant byte address 0x4 - core index']
  #allocation1 [shape = 'u32[144,128]{1,0:T(1,128)}', space=vmem, size = 0x12000, scoped, tag = 'internal scratch']
  #allocation2 [shape = 'f32[16,256]{1,0:T(8,128)}', space=vmem, size = 0x4000, scoped, tag = 'scratch operand']
  #allocation3 [shape = 's32[1]{0}', space=sflag, size = 0x4, scoped, tag = 'scoped memory for tpu_custom_call.1']
  #allocation4 [shape = 'u8[512]{0}', space=smem, size = 0x200, scoped, tag = 'prefetched SMEM operand 0']
  %s0 = inlined_call_operand.hbm [shape: f32[5], index: 0, kind: input, shape index: {}]
  %s1 = inlined_call_operand.hbm [shape: f32[4,32,128], index: 1, kind: input, shape index: {}]
  %s2 = inlined_call_operand.hbm [shape: f32[128,256], index: 2, kind: input, shape index: {}]
  %s3 = inlined_call_operand.vmem [shape: f32[1,256], index: 3, kind: input, shape index: {}]
  %s4 = inlined_call_operand.hbm [shape: f32[256,128], index: 4, kind: input, shape index: {}]
  %s5 = inlined_call_operand.vmem [shape: f32[1,128], index: 5, kind: input, shape index: {}]
  %s6 = inlined_call_operand.hbm [shape: f32[32,128], index: 6, kind: output, shape index: {}]
  %s7 = sld [smem:[#allocation0]]
  $region73: #{tpu_custom_call.1} parent=0
    _
  %s9 = ssub.s32 1, %s7
  %s10 = scalar_select 0, %s9, %s7
  %12 = dma.hbm_to_smem %s0, 16, [#allocation4], [#allocation3]
  %13 = dma.done [#allocation3], 16
  %14 = sfence
  $region1: #{tpu_custom_call.1} parent=0
    #allocation5 [shape = 'u8[16384]{0}', space=vmem, size = 0x4000, scoped, tag = 'input window, operand 1']
    #allocation6 [shape = 's32[2]{0}', space=sflag, size = 0x8, scoped, tag = 'scoped memory for tpu_custom_call.1']
    #allocation7 [shape = 's32[2]{0}', space=sflag, size = 0x8, scoped, tag = 'scoped memory for tpu_custom_call.1']
    #allocation8 [shape = 'u8[131072]{0}', space=vmem, size = 0x20000, scoped, tag = 'input window, operand 2, single buffered']
    #allocation9 [shape = 's32[1]{0}', space=sflag, size = 0x4, scoped, tag = 'scoped memory for tpu_custom_call.1']
    #allocation10 [shape = 'u8[131072]{0}', space=vmem, size = 0x20000, scoped, tag = 'input window, operand 4, single buffered']
    #allocation11 [shape = 'u8[16384]{0}', space=vmem, size = 0x4000, scoped, tag = 'output window, operand 0']
    %15 = vsyncpa [#allocation6], 0
    %s16 = scalar_lea.sflag [#allocation6], 1
    %17 = vsyncpa %s16, 0
    %18 = vsyncpa [#allocation9], 0
    %19 = vsyncpa [#allocation7], 0
    %s20 = scalar_lea.sflag [#allocation7], 1
    %21 = vsyncpa %s20, 0
    loop: start=0, step=1, limit=10
    $region2: #{tpu_custom_call.1} parent=1 // loop_pre_header
      _
    $region3: #{tpu_custom_call.1} parent=1 // loop_header
      %s23 = sphi 0, %s27
      %p24 = scmp.ge.s32.totalorder %s23, 10
      %s30 = sphi 0, %s42
      %s31 = sphi 0, %s38
      %s32 = sphi 0, %s30
      %s33 = sphi 0, %s31
      %s34 = sphi 0, %s32
      %s35 = sphi 0, %s33
      %s47 = sphi 0, %s49
      %s50 = sphi 0, %s47
      %s51 = sphi 0, %s50
      %s67 = sphi 0, %s51
      %s71 = sphi 0, %s71
      %s73 = sphi 0, %s71
      %s74 = sphi 0, %s73
      %s88 = sphi 0, %s74
      %s92 = sphi 0, %s92
      %s94 = sphi 0, %s92
      %s95 = sphi 0, %s94
      %s109 = sphi 0, %s95
      %s113 = sphi 0, %s113
      %s115 = sphi 0, %s113
      %s116 = sphi 0, %s115
      %s130 = sphi 0, %s116
      %s134 = sphi 0, %s134
      %s136 = sphi 0, %s134
      %s137 = sphi 0, %s136
      %s151 = sphi 0, %s137
      %s157 = sphi 0, %s159
      %s160 = sphi 0, %s157
      %s161 = sphi 0, %s160
      %s177 = sphi 0, %s161
    $region4: #{tpu_custom_call.1} parent=1 // loop_header_branch
      %26 = sbr.rel (%p24) target = $region8
    $region5: #{tpu_custom_call.1} parent=1 // loop_body
      %s28 = ssub.s32 %s23, 1
      %s29 = ssub.s32 %s23, 2
      %s36 = sadd.s32 1, %s31
      %p37 = scmp.ge.s32.totalorder %s36, 4
      %s38 = scalar_select %p37, 0, %s36
      %s39 = sadd.s32 1, %s30
      %s40 = scalar_select %p37, %s39, %s30
      %p41 = scmp.ge.s32.totalorder %s40, 2
      %s42 = scalar_select %p41, 0, %s40
      %s43 = ssub.s32 %s31, %s38
      %s44 = ssub.s32 %s30, %s42
      %s45 = sor.u32 %s43, %s44
      %p46 = scmp.eq.s32.totalorder %s45, 0
      %s48 = sadd.s32 %s47, 1
      %s49 = scalar_select %p46, %s47, %s48
      %p52 = pneg %p46
      %p53 = scmp.eq.s32.totalorder %s23, 7
      %p54 = por %p52, %p53
      %p55 = scmp.ne.s32.totalorder %s47, %s50
      %p56 = scmp.eq.s32.totalorder %s23, 0
      %p57 = por %p55, %p56
      %p58 = scmp.ne.s32.totalorder %s47, %s50
      %p59 = scmp.eq.s32.totalorder %s28, 7
      %p60 = por %p58, %p59
      %p61 = scmp.ne.s32.totalorder %s50, %s51
      %p62 = scmp.eq.s32.totalorder %s28, 0
      %p63 = por %p61, %p62
      %p64 = scmp.ne.s32.totalorder %s50, %s51
      %p65 = scmp.eq.s32.totalorder %s29, 7
      %p66 = por %p64, %p65
      %p68 = scmp.ne.s32.totalorder %s51, %s67
      %p69 = scmp.eq.s32.totalorder %s29, 0
      %p70 = por %p68, %p69
      %s72 = sadd.s32 %s71, 1
      %p75 = scmp.eq.s32.totalorder %s23, 7
      %p76 = scmp.ne.s32.totalorder %s71, %s73
      %p77 = scmp.eq.s32.totalorder %s23, 0
      %p78 = por %p76, %p77
      %p79 = scmp.ne.s32.totalorder %s71, %s73
      %p80 = scmp.eq.s32.totalorder %s28, 7
      %p81 = por %p79, %p80
      %p82 = scmp.ne.s32.totalorder %s73, %s74
      %p83 = scmp.eq.s32.totalorder %s28, 0
      %p84 = por %p82, %p83
      %p85 = scmp.ne.s32.totalorder %s73, %s74
      %p86 = scmp.eq.s32.totalorder %s29, 7
      %p87 = por %p85, %p86
      %p89 = scmp.ne.s32.totalorder %s74, %s88
      %p90 = scmp.eq.s32.totalorder %s29, 0
      %p91 = por %p89, %p90
      %s93 = sadd.s32 %s92, 1
      %p96 = scmp.eq.s32.totalorder %s23, 7
      %p97 = scmp.ne.s32.totalorder %s92, %s94
      %p98 = scmp.eq.s32.totalorder %s23, 0
      %p99 = por %p97, %p98
      %p100 = scmp.ne.s32.totalorder %s92, %s94
      %p101 = scmp.eq.s32.totalorder %s28, 7
      %p102 = por %p100, %p101
      %p103 = scmp.ne.s32.totalorder %s94, %s95
      %p104 = scmp.eq.s32.totalorder %s28, 0
      %p105 = por %p103, %p104
      %p106 = scmp.ne.s32.totalorder %s94, %s95
      %p107 = scmp.eq.s32.totalorder %s29, 7
      %p108 = por %p106, %p107
      %p110 = scmp.ne.s32.totalorder %s95, %s109
      %p111 = scmp.eq.s32.totalorder %s29, 0
      %p112 = por %p110, %p111
      %s114 = sadd.s32 %s113, 1
      %p117 = scmp.eq.s32.totalorder %s23, 7
      %p118 = scmp.ne.s32.totalorder %s113, %s115
      %p119 = scmp.eq.s32.totalorder %s23, 0
      %p120 = por %p118, %p119
      %p121 = scmp.ne.s32.totalorder %s113, %s115
      %p122 = scmp.eq.s32.totalorder %s28, 7
      %p123 = por %p121, %p122
      %p124 = scmp.ne.s32.totalorder %s115, %s116
      %p125 = scmp.eq.s32.totalorder %s28, 0
      %p126 = por %p124, %p125
      %p127 = scmp.ne.s32.totalorder %s115, %s116
      %p128 = scmp.eq.s32.totalorder %s29, 7
      %p129 = por %p127, %p128
      %p131 = scmp.ne.s32.totalorder %s116, %s130
      %p132 = scmp.eq.s32.totalorder %s29, 0
      %p133 = por %p131, %p132
      %s135 = sadd.s32 %s134, 1
      %p138 = scmp.eq.s32.totalorder %s23, 7
      %p139 = scmp.ne.s32.totalorder %s134, %s136
      %p140 = scmp.eq.s32.totalorder %s23, 0
      %p141 = por %p139, %p140
      %p142 = scmp.ne.s32.totalorder %s134, %s136
      %p143 = scmp.eq.s32.totalorder %s28, 7
      %p144 = por %p142, %p143
      %p145 = scmp.ne.s32.totalorder %s136, %s137
      %p146 = scmp.eq.s32.totalorder %s28, 0
      %p147 = por %p145, %p146
      %p148 = scmp.ne.s32.totalorder %s136, %s137
      %p149 = scmp.eq.s32.totalorder %s29, 7
      %p150 = por %p148, %p149
      %p152 = scmp.ne.s32.totalorder %s137, %s151
      %p153 = scmp.eq.s32.totalorder %s29, 0
      %p154 = por %p152, %p153
      %s155 = ssub.s32 %s30, %s42
      %p156 = scmp.eq.s32.totalorder %s155, 0
      %s158 = sadd.s32 %s157, 1
      %s159 = scalar_select %p156, %s157, %s158
      %p162 = pneg %p156
      %p163 = scmp.eq.s32.totalorder %s23, 7
      %p164 = por %p162, %p163
      %p165 = scmp.ne.s32.totalorder %s157, %s160
      %p166 = scmp.eq.s32.totalorder %s23, 0
      %p167 = por %p165, %p166
      %p168 = scmp.ne.s32.totalorder %s157, %s160
      %p169 = scmp.eq.s32.totalorder %s28, 7
      %p170 = por %p168, %p169
      %p171 = scmp.ne.s32.totalorder %s160, %s161
      %p172 = scmp.eq.s32.totalorder %s28, 0
      %p173 = por %p171, %p172
      %p174 = scmp.ne.s32.totalorder %s160, %s161
      %p175 = scmp.eq.s32.totalorder %s29, 7
      %p176 = por %p174, %p175
      %p178 = scmp.ne.s32.totalorder %s161, %s177
      %p179 = scmp.eq.s32.totalorder %s29, 0
      %p180 = por %p178, %p179
      %p181 = scmp.le.s32.totalorder 1, %s23
      %p182 = scmp.lt.s32.totalorder %s23, 9
      %p183 = pnand %p181, %p182
      %p184 = pneg %p183
      // Predicated region
      $region9: #{tpu_custom_call.1} parent=5 // pred_check
        _
      $region10: #{tpu_custom_call.1} parent=5 // pred_check_branch
        %186 = sbr.rel (%p183) target = $region12
      $region11: #{tpu_custom_call.1} parent=5 // pred_region
        %s187 = ssub.s32 %s23, 1
        // Predicated region
        $region13: #{tpu_custom_call.1} parent=11 // pred_check
          %p188 = pneg %p84
        $region14: #{tpu_custom_call.1} parent=11 // pred_check_branch
          %190 = sbr.rel (%p188) target = $region16
        $region15: #{tpu_custom_call.1} parent=11 // pred_region
          %s192 = ssub.s32 4096, 4096
          %193 = vsyncadd [#allocation9], %s192
          %s194 = sshll.u32 [#allocation8], 4
          %s195 = int_to_ptr.vmem [resolvable:$true] %s194
          %200 = dma.hbm_to_vmem [thread:$0]  %s2, 4096, %s195, [#allocation9], 256, 256, 16
        $region16: #{tpu_custom_call.1} parent=11 // pred_fallthru
          _
        // Predicated region
        $region17: #{tpu_custom_call.1} parent=11 // pred_check
          %p201 = pneg %p105
        $region18: #{tpu_custom_call.1} parent=11 // pred_check_branch
          %203 = sbr.rel (%p201) target = $region20
        $region19: #{tpu_custom_call.1} parent=11 // pred_region
          _
        $region20: #{tpu_custom_call.1} parent=11 // pred_fallthru
          _
        // Predicated region
        $region21: #{tpu_custom_call.1} parent=11 // pred_check
          %p204 = pneg %p126
        $region22: #{tpu_custom_call.1} parent=11 // pred_check_branch
          %206 = sbr.rel (%p204) target = $region24
        $region23: #{tpu_custom_call.1} parent=11 // pred_region
          %s208 = ssub.s32 4096, 4096
          %209 = vsyncadd [#allocation9], %s208
          %s210 = sshll.u32 [#allocation10], 4
          %s211 = int_to_ptr.vmem [resolvable:$true] %s210
          %216 = dma.hbm_to_vmem [thread:$0]  %s4, 4096, %s211, [#allocation9], 128, 128, 8
        $region24: #{tpu_custom_call.1} parent=11 // pred_fallthru
          _
        // Predicated region
        $region25: #{tpu_custom_call.1} parent=11 // pred_check
          %p217 = pneg %p147
        $region26: #{tpu_custom_call.1} parent=11 // pred_check_branch
          %219 = sbr.rel (%p217) target = $region28
        $region27: #{tpu_custom_call.1} parent=11 // pred_region
          _
        $region28: #{tpu_custom_call.1} parent=11 // pred_fallthru
          _
      $region12: #{tpu_custom_call.1} parent=5 // pred_fallthru
        _
      %p220 = scmp.lt.s32.totalorder %s23, 8
      // Predicated region
      $region29: #{tpu_custom_call.1} parent=5 // pred_check
        %p221 = pneg %p220
      $region30: #{tpu_custom_call.1} parent=5 // pred_check_branch
        %223 = sbr.rel (%p221) target = $region32
      $region31: #{tpu_custom_call.1} parent=5 // pred_region
        // Predicated region
        $region33: #{tpu_custom_call.1} parent=31 // pred_check
          %p224 = pneg %p57
        $region34: #{tpu_custom_call.1} parent=31 // pred_check_branch
          %226 = sbr.rel (%p224) target = $region36
        $region35: #{tpu_custom_call.1} parent=31 // pred_region
          %s227 = sand.u32 %s47, 1
          %s228 = scalar_lea.sflag [#allocation6], %s227
          %s229 = sand.u32 %s47, 1
          %s230 = smul.addr %s229, 16
          %s231 = scalar_lea.vmem [#allocation5], %s230
          %s232 = smul.u32 2, %s30
          %s234 = ssub.s32 256, 256
          %235 = vsyncadd %s228, %s234
          %s236 = smul.addr %s31, 4
          %s237 = sadd.s32 %s232, %s236
          %s238 = smul.addr %s237, 128
          %s239 = scalar_lea.hbm %s1, %s238
          %s240 = sshll.u32 %s231, 4
          %s241 = int_to_ptr.vmem [resolvable:$true] %s240
          %246 = dma.hbm_to_vmem [thread:$0]  %s239, 256, %s241, %s228, 128, 128, 8
        $region36: #{tpu_custom_call.1} parent=31 // pred_fallthru
          _
      $region32: #{tpu_custom_call.1} parent=5 // pred_fallthru
        _
      %p247 = scmp.le.s32.totalorder 1, %s23
      %p248 = scmp.lt.s32.totalorder %s23, 9
      %p249 = pnand %p247, %p248
      %p250 = pneg %p249
      // Predicated region
      $region37: #{tpu_custom_call.1} parent=5 // pred_check
        _
      $region38: #{tpu_custom_call.1} parent=5 // pred_check_branch
        %252 = sbr.rel (%p249) target = $region40
      $region39: #{tpu_custom_call.1} parent=5 // pred_region
        %s253 = ssub.s32 %s23, 1
        %s254 = sand.u32 %s50, 1
        %s255 = scalar_lea.sflag [#allocation6], %s254
        %s256 = sand.u32 %s50, 1
        %s257 = smul.addr %s256, 16
        %s258 = scalar_lea.vmem [#allocation5], %s257
        // Predicated region
        $region41: #{tpu_custom_call.1} parent=39 // pred_check
          %p259 = pneg %p63
        $region42: #{tpu_custom_call.1} parent=39 // pred_check_branch
          %261 = sbr.rel (%p259) target = $region44
        $region43: #{tpu_custom_call.1} parent=39 // pred_region
          %262 = dma.done %s255, 256
        $region44: #{tpu_custom_call.1} parent=39 // pred_fallthru
          _
        // Predicated region
        $region45: #{tpu_custom_call.1} parent=39 // pred_check
          %p263 = pneg %p84
        $region46: #{tpu_custom_call.1} parent=39 // pred_check_branch
          %265 = sbr.rel (%p263) target = $region48
        $region47: #{tpu_custom_call.1} parent=39 // pred_region
          %266 = dma.done [#allocation9], 4096
        $region48: #{tpu_custom_call.1} parent=39 // pred_fallthru
          _
        // Predicated region
        $region49: #{tpu_custom_call.1} parent=39 // pred_check
          %p267 = pneg %p126
        $region50: #{tpu_custom_call.1} parent=39 // pred_check_branch
          %269 = sbr.rel (%p267) target = $region52
        $region51: #{tpu_custom_call.1} parent=39 // pred_region
          %270 = dma.done [#allocation9], 4096
        $region52: #{tpu_custom_call.1} parent=39 // pred_fallthru
          _
        %s271 = sand.u32 %s50, 1
        %s272 = scalar_lea.sflag [#allocation6], %s271
        %s273 = sand.u32 %s50, 1
        %s274 = smul.addr %s273, 16
        %s275 = scalar_lea.vmem [#allocation5], %s274
        %p276 = pneg %p63
        %p277 = pneg %p60
        %p278 = pneg %p84
        %p279 = pneg %p81
        %p280 = pneg %p105
        %p281 = pneg %p102
        %p282 = pneg %p126
        %p283 = pneg %p123
        %p284 = pneg %p147
        %p285 = pneg %p144
        %p286 = pneg %p173
        %p287 = pneg %p170
        %s288 = sand.u32 %s160, 1
        %s289 = scalar_lea.sflag [#allocation7], %s288
        %s290 = sand.u32 %s160, 1
        %s291 = smul.addr %s290, 16
        %s292 = scalar_lea.vmem [#allocation11], %s291
        %s293 = smul.u32 2, %s32
        %s294 = smul.u32 2, %s32
        %p295 = scmp.eq.s32.totalorder %s33, 0
        // Predicated region
        $region53: #{tpu_custom_call.1} parent=39 // pred_check
          %p296 = pneg %p295
        $region54: #{tpu_custom_call.1} parent=39 // pred_check_branch
          %298 = sbr.rel (%p296) target = $region56
        $region55: #{tpu_custom_call.1} parent=39 // pred_region
          %299 = vst [vmem:[#allocation2] sm:$0xff] 0.0
          %300 = vst [vmem:[#allocation2 + $0x8] sm:$0xff] 0.0
          %301 = vst [vmem:[#allocation2 + $0x10] sm:$0xff] 0.0
          %302 = vst [vmem:[#allocation2 + $0x18] sm:$0xff] 0.0
        $region56: #{tpu_custom_call.1} parent=39 // pred_fallthru
          _
        %s303 = sld [smem:[#allocation4 + %s33]]
        %v304 = vld [vmem:[%s258] sm:$0xff]
        %v305 = vld [vmem:[%s258 + $0x8] sm:$0xff]
        %v306 = vstv %s303
        %v307 = vmul.f32 %v304, %v306
        %v308 = vmul.f32 %v305, %v306
        %v309 = vld [vmem:[#allocation8] sm:$0xff]
        %v310 = vld [vmem:[#allocation8 + $0x8] sm:$0xff]
        %v311 = vld [vmem:[#allocation8 + $0x10] sm:$0xff]
        %v312 = vld [vmem:[#allocation8 + $0x18] sm:$0xff]
        %v313 = vld [vmem:[#allocation8 + $0x20] sm:$0xff]
        %v314 = vld [vmem:[#allocation8 + $0x28] sm:$0xff]
        %v315 = vld [vmem:[#allocation8 + $0x30] sm:$0xff]
        %v316 = vld [vmem:[#allocation8 + $0x38] sm:$0xff]
        %v317 = vld [vmem:[#allocation8 + $0x40] sm:$0xff]
        %v318 = vld [vmem:[#allocation8 + $0x48] sm:$0xff]
        %v319 = vld [vmem:[#allocation8 + $0x50] sm:$0xff]
        %v320 = vld [vmem:[#allocation8 + $0x58] sm:$0xff]
        %v321 = vld [vmem:[#allocation8 + $0x60] sm:$0xff]
        %v322 = vld [vmem:[#allocation8 + $0x68] sm:$0xff]
        %v323 = vld [vmem:[#allocation8 + $0x70] sm:$0xff]
        %v324 = vld [vmem:[#allocation8 + $0x78] sm:$0xff]
        %v325 = vld [vmem:[#allocation8 + $0x80] sm:$0xff]
        %v326 = vld [vmem:[#allocation8 + $0x88] sm:$0xff]
        %v327 = vld [vmem:[#allocation8 + $0x90] sm:$0xff]
        %v328 = vld [vmem:[#allocation8 + $0x98] sm:$0xff]
        %v329 = vld [vmem:[#allocation8 + $0xa0] sm:$0xff]
        %v330 = vld [vmem:[#allocation8 + $0xa8] sm:$0xff]
        %v331 = vld [vmem:[#allocation8 + $0xb0] sm:$0xff]
        %v332 = vld [vmem:[#allocation8 + $0xb8] sm:$0xff]
        %v333 = vld [vmem:[#allocation8 + $0xc0] sm:$0xff]
        %v334 = vld [vmem:[#allocation8 + $0xc8] sm:$0xff]
        %v335 = vld [vmem:[#allocation8 + $0xd0] sm:$0xff]
        %v336 = vld [vmem:[#allocation8 + $0xd8] sm:$0xff]
        %v337 = vld [vmem:[#allocation8 + $0xe0] sm:$0xff]
        %v338 = vld [vmem:[#allocation8 + $0xe8] sm:$0xff]
        %v339 = vld [vmem:[#allocation8 + $0xf0] sm:$0xff]
        %v340 = vld [vmem:[#allocation8 + $0xf8] sm:$0xff]
        %v341 = vld [vmem:[%s3] sm:$0x3]
        %v342 = vmul.f32 %v306, %v341
        %v344 = vlaneseq
        %v345 = vshrl.u32 %v344, 7
        %v346 = vsub.s32 0, %v345
        %v347 = vrot.slane %v342, %v346
        %v348 = vlaneseq
        %v349 = vshrl.u32 %v348, 7
        %v350 = vsub.s32 1, %v349
        %v351 = vrot.slane %v342, %v350
        %354 = vmatprep.subr.mxu0 %v310
        %355 = vmatpush1.msra.mxu0 %v309
        %356 = vmatprep.subr.mxu0 %v312
        %357 = vmatpush1.msra.mxu0 %v311
        %358 = vmatprep.subr.mxu0 %v314
        %359 = vmatpush1.msra.mxu0 %v313
        %360 = vmatprep.subr.mxu0 %v316
        %361 = vmatpush1.msra.mxu0 %v315
        %362 = vmatprep.subr.mxu0 %v318
        %363 = vmatpush1.msra.mxu0 %v317
        %364 = vmatprep.subr.mxu0 %v320
        %365 = vmatpush1.msra.mxu0 %v319
        %366 = vmatprep.subr.mxu0 %v322
        %367 = vmatpush1.msra.mxu0 %v321
        %368 = vmatprep.subr.mxu0 %v324
        %369 = vmatpush1.msra.mxu0 %v323
        %370 = vmatprep.subr.mxu0 %v326
        %371 = vmatpush1.msra.mxu0 %v325
        %372 = vmatprep.subr.mxu0 %v328
        %373 = vmatpush1.msra.mxu0 %v327
        %374 = vmatprep.subr.mxu0 %v330
        %375 = vmatpush1.msra.mxu0 %v329
        %376 = vmatprep.subr.mxu0 %v332
        %377 = vmatpush1.msra.mxu0 %v331
        %378 = vmatprep.subr.mxu0 %v334
        %379 = vmatpush1.msra.mxu0 %v333
        %380 = vmatprep.subr.mxu0 %v336
        %381 = vmatpush1.msra.mxu0 %v335
        %382 = vmatprep.subr.mxu0 %v338
        %383 = vmatpush1.msra.mxu0 %v337
        %384 = vmatprep.subr.mxu0 %v340
        %385 = vmatpush1.msra.mxu0 %v339
        %386 = vmatprep.subr.mxu0 0.0
        %387 = vmatpush1.msra.mxu0 0.0
        %388 = vmatprep.subr.mxu0 0.0
        %389 = vmatpush1.msra.mxu0 0.0
        %390 = vmatprep.subr.mxu0 0.0
        %391 = vmatpush1.msra.mxu0 0.0
        %392 = vmatprep.subr.mxu0 0.0
        %393 = vmatpush1.msra.mxu0 0.0
        %394 = vmatprep.subr.mxu0 0.0
        %395 = vmatpush1.msra.mxu0 0.0
        %396 = vmatprep.subr.mxu0 0.0
        %397 = vmatpush1.msra.mxu0 0.0
        %398 = vmatprep.subr.mxu0 0.0
        %399 = vmatpush1.msra.mxu0 0.0
        %400 = vmatprep.subr.mxu0 0.0
        %401 = vmatpush1.msra.mxu0 0.0
        %402 = vmatprep.subr.mxu0 0.0
        %403 = vmatpush1.msra.mxu0 0.0
        %404 = vmatprep.subr.mxu0 0.0
        %405 = vmatpush1.msra.mxu0 0.0
        %406 = vmatprep.subr.mxu0 0.0
        %407 = vmatpush1.msra.mxu0 0.0
        %408 = vmatprep.subr.mxu0 0.0
        %409 = vmatpush1.msra.mxu0 0.0
        %410 = vmatprep.subr.mxu0 0.0
        %411 = vmatpush1.msra.mxu0 0.0
        %412 = vmatprep.subr.mxu0 0.0
        %413 = vmatpush1.msra.mxu0 0.0
        %414 = vmatprep.subr.mxu0 0.0
        %415 = vmatpush1.msra.mxu0 0.0
        %416 = vmatprep.subr.mxu0 0.0
        %417 = vmatpush1.msra.mxu0 0.0
        %418 = vmatprep.mubr.f32.mxu0 0.0
        %419 = vmatmul.mubr.f32.gmra.mrb[0].mxu0 %v307
        %v420 = vpop.f32.mrb[0].mxu0
        %v421 = vadd.f32 %v347, %v420
        %v422 = vpop.f32.mrb[0].mxu0
        %v423 = vadd.f32 %v351, %v422
        %424 = vmatprep.mubr.f32.mxu0 0.0
        %425 = vmatmul.mubr.f32.gmra.mrb[0].mxu0 %v308
        %v426 = vpop.f32.mrb[0].mxu0
        %v427 = vadd.f32 %v347, %v426
        %v428 = vpop.f32.mrb[0].mxu0
        %v429 = vadd.f32 %v351, %v428
        %430 = vdwg.mxu0
        %v431 = vmax.f32 %v421, 0.0
        %v432 = vmax.f32 %v423, 0.0
        %v433 = vmax.f32 %v427, 0.0
        %v434 = vmax.f32 %v429, 0.0
        %v435 = vld [vmem:[#allocation2] sm:$0xff]
        %v436 = vld [vmem:[#allocation2 + $0x8] sm:$0xff]
        %v437 = vld [vmem:[#allocation2 + $0x10] sm:$0xff]
        %v438 = vld [vmem:[#allocation2 + $0x18] sm:$0xff]
        %v439 = vadd.f32 %v435, %v431
        %v440 = vadd.f32 %v436, %v432
        %v441 = vadd.f32 %v437, %v433
        %v442 = vadd.f32 %v438, %v434
        %443 = vst [vmem:[#allocation2] sm:$0xff] %v439
        %444 = vst [vmem:[#allocation2 + $0x8] sm:$0xff] %v440
        %445 = vst [vmem:[#allocation2 + $0x10] sm:$0xff] %v441
        %446 = vst [vmem:[#allocation2 + $0x18] sm:$0xff] %v442
        %p447 = scmp.eq.s32.totalorder %s33, 3
        // Predicated region
        $region57: #{tpu_custom_call.1} parent=39 // pred_check
          %p448 = pneg %p447
        $region58: #{tpu_custom_call.1} parent=39 // pred_check_branch
          %450 = sbr.rel (%p448) target = $region60
        $region59: #{tpu_custom_call.1} parent=39 // pred_region
          %v451 = vld [vmem:[#allocation2] sm:$0xff]
          %v452 = vld [vmem:[#allocation2 + $0x8] sm:$0xff]
          %v453 = vld [vmem:[#allocation2 + $0x10] sm:$0xff]
          %v454 = vld [vmem:[#allocation2 + $0x18] sm:$0xff]
          %v455 = vld [vmem:[#allocation10] sm:$0xff]
          %v456 = vld [vmem:[#allocation10 + $0x8] sm:$0xff]
          %v457 = vld [vmem:[#allocation10 + $0x10] sm:$0xff]
          %v458 = vld [vmem:[#allocation10 + $0x18] sm:$0xff]
          %v459 = vld [vmem:[#allocation10 + $0x20] sm:$0xff]
          %v460 = vld [vmem:[#allocation10 + $0x28] sm:$0xff]
          %v461 = vld [vmem:[#allocation10 + $0x30] sm:$0xff]
          %v462 = vld [vmem:[#allocation10 + $0x38] sm:$0xff]
          %v463 = vld [vmem:[#allocation10 + $0x40] sm:$0xff]
          %v464 = vld [vmem:[#allocation10 + $0x48] sm:$0xff]
          %v465 = vld [vmem:[#allocation10 + $0x50] sm:$0xff]
          %v466 = vld [vmem:[#allocation10 + $0x58] sm:$0xff]
          %v467 = vld [vmem:[#allocation10 + $0x60] sm:$0xff]
          %v468 = vld [vmem:[#allocation10 + $0x68] sm:$0xff]
          %v469 = vld [vmem:[#allocation10 + $0x70] sm:$0xff]
          %v470 = vld [vmem:[#allocation10 + $0x78] sm:$0xff]
          %v471 = vld [vmem:[#allocation10 + $0x80] sm:$0xff]
          %v472 = vld [vmem:[#allocation10 + $0x88] sm:$0xff]
          %v473 = vld [vmem:[#allocation10 + $0x90] sm:$0xff]
          %v474 = vld [vmem:[#allocation10 + $0x98] sm:$0xff]
          %v475 = vld [vmem:[#allocation10 + $0xa0] sm:$0xff]
          %v476 = vld [vmem:[#allocation10 + $0xa8] sm:$0xff]
          %v477 = vld [vmem:[#allocation10 + $0xb0] sm:$0xff]
          %v478 = vld [vmem:[#allocation10 + $0xb8] sm:$0xff]
          %v479 = vld [vmem:[#allocation10 + $0xc0] sm:$0xff]
          %v480 = vld [vmem:[#allocation10 + $0xc8] sm:$0xff]
          %v481 = vld [vmem:[#allocation10 + $0xd0] sm:$0xff]
          %v482 = vld [vmem:[#allocation10 + $0xd8] sm:$0xff]
          %v483 = vld [vmem:[#allocation10 + $0xe0] sm:$0xff]
          %v484 = vld [vmem:[#allocation10 + $0xe8] sm:$0xff]
          %v485 = vld [vmem:[#allocation10 + $0xf0] sm:$0xff]
          %v486 = vld [vmem:[#allocation10 + $0xf8] sm:$0xff]
          %s487 = sld [smem:[#allocation4 + $0x4]]
          %v488 = vld [vmem:[%s5] sm:$0x1]
          %v489 = vstv %s487
          %v490 = vmul.f32 %v489, %v488
          %v492 = vlaneseq
          %v493 = vshrl.u32 %v492, 7
          %v494 = vsub.s32 0, %v493
          %v495 = vrot.slane %v490, %v494
          %497 = vmatprep.subr.mxu0 0.0
          %498 = vmatpush1.msra.mxu0 %v455
          %499 = vmatprep.subr.mxu0 0.0
          %500 = vmatpush1.msra.mxu0 %v456
          %501 = vmatprep.subr.mxu0 0.0
          %502 = vmatpush1.msra.mxu0 %v457
          %503 = vmatprep.subr.mxu0 0.0
          %504 = vmatpush1.msra.mxu0 %v458
          %505 = vmatprep.subr.mxu0 0.0
          %506 = vmatpush1.msra.mxu0 %v459
          %507 = vmatprep.subr.mxu0 0.0
          %508 = vmatpush1.msra.mxu0 %v460
          %509 = vmatprep.subr.mxu0 0.0
          %510 = vmatpush1.msra.mxu0 %v461
          %511 = vmatprep.subr.mxu0 0.0
          %512 = vmatpush1.msra.mxu0 %v462
          %513 = vmatprep.subr.mxu0 0.0
          %514 = vmatpush1.msra.mxu0 %v463
          %515 = vmatprep.subr.mxu0 0.0
          %516 = vmatpush1.msra.mxu0 %v464
          %517 = vmatprep.subr.mxu0 0.0
          %518 = vmatpush1.msra.mxu0 %v465
          %519 = vmatprep.subr.mxu0 0.0
          %520 = vmatpush1.msra.mxu0 %v466
          %521 = vmatprep.subr.mxu0 0.0
          %522 = vmatpush1.msra.mxu0 %v467
          %523 = vmatprep.subr.mxu0 0.0
          %524 = vmatpush1.msra.mxu0 %v468
          %525 = vmatprep.subr.mxu0 0.0
          %526 = vmatpush1.msra.mxu0 %v469
          %527 = vmatprep.subr.mxu0 0.0
          %528 = vmatpush1.msra.mxu0 %v470
          %529 = vmatprep.subr.mxu0 0.0
          %530 = vmatpush1.msra.mxu0 %v471
          %531 = vmatprep.subr.mxu0 0.0
          %532 = vmatpush1.msra.mxu0 %v472
          %533 = vmatprep.subr.mxu0 0.0
          %534 = vmatpush1.msra.mxu0 %v473
          %535 = vmatprep.subr.mxu0 0.0
          %536 = vmatpush1.msra.mxu0 %v474
          %537 = vmatprep.subr.mxu0 0.0
          %538 = vmatpush1.msra.mxu0 %v475
          %539 = vmatprep.subr.mxu0 0.0
          %540 = vmatpush1.msra.mxu0 %v476
          %541 = vmatprep.subr.mxu0 0.0
          %542 = vmatpush1.msra.mxu0 %v477
          %543 = vmatprep.subr.mxu0 0.0
          %544 = vmatpush1.msra.mxu0 %v478
          %545 = vmatprep.subr.mxu0 0.0
          %546 = vmatpush1.msra.mxu0 %v479
          %547 = vmatprep.subr.mxu0 0.0
          %548 = vmatpush1.msra.mxu0 %v480
          %549 = vmatprep.subr.mxu0 0.0
          %550 = vmatpush1.msra.mxu0 %v481
          %551 = vmatprep.subr.mxu0 0.0
          %552 = vmatpush1.msra.mxu0 %v482
          %553 = vmatprep.subr.mxu0 0.0
          %554 = vmatpush1.msra.mxu0 %v483
          %555 = vmatprep.subr.mxu0 0.0
          %556 = vmatpush1.msra.mxu0 %v484
          %557 = vmatprep.subr.mxu0 0.0
          %558 = vmatpush1.msra.mxu0 %v485
          %559 = vmatprep.subr.mxu0 0.0
          %560 = vmatpush1.msra.mxu0 %v486
          %561 = vmatprep.mubr.f32.mxu0 %v452
          %562 = vmatmul.mubr.f32.gmra.mrb[0].mxu0 %v451
          %v563 = vpop.f32.mrb[0].mxu0
          %v564 = vadd.f32 %v495, %v563
          %v565 = vpop.f32.mrb[0].mxu0
          %566 = vmatprep.mubr.f32.mxu0 %v454
          %567 = vmatmul.mubr.f32.gmra.mrb[0].mxu0 %v453
          %v568 = vpop.f32.mrb[0].mxu0
          %v569 = vadd.f32 %v495, %v568
          %v570 = vpop.f32.mrb[0].mxu0
          %571 = vdwg.mxu0
          %572 = vst [vmem:[%s292] sm:$0xff] %v564
          %573 = vst [vmem:[%s292 + $0x8] sm:$0xff] %v569
        $region60: #{tpu_custom_call.1} parent=39 // pred_fallthru
          _
        %s574 = sand.u32 %s160, 1
        %s575 = scalar_lea.sflag [#allocation7], %s574
        %s576 = sand.u32 %s160, 1
        %s577 = smul.addr %s576, 16
        %s578 = scalar_lea.vmem [#allocation11], %s577
        // Predicated region
        $region61: #{tpu_custom_call.1} parent=39 // pred_check
          %p579 = pneg %p170
        $region62: #{tpu_custom_call.1} parent=39 // pred_check_branch
          %581 = sbr.rel (%p579) target = $region64
        $region63: #{tpu_custom_call.1} parent=39 // pred_region
          %s582 = smul.u32 2, %s32
          %s584 = ssub.s32 256, 256
          %585 = vsyncadd %s575, %s584
          %s586 = smul.addr %s582, 128
          %s587 = scalar_lea.hbm %s6, %s586
          %s588 = sshll.u32 %s578, 4
          %s589 = int_to_ptr.vmem [resolvable:$true] %s588
          %594 = dma.vmem_to_hbm [thread:$0]  %s589, 256, %s587, %s575, 128, 128, 8
        $region64: #{tpu_custom_call.1} parent=39 // pred_fallthru
          _
      $region40: #{tpu_custom_call.1} parent=5 // pred_fallthru
        _
      %p595 = scmp.le.s32.totalorder 2, %s23
      // Predicated region
      $region65: #{tpu_custom_call.1} parent=5 // pred_check
        %p596 = pneg %p595
      $region66: #{tpu_custom_call.1} parent=5 // pred_check_branch
        %598 = sbr.rel (%p596) target = $region68
      $region67: #{tpu_custom_call.1} parent=5 // pred_region
        %s599 = ssub.s32 %s23, 2
        // Predicated region
        $region69: #{tpu_custom_call.1} parent=67 // pred_check
          %p600 = pneg %p176
        $region70: #{tpu_custom_call.1} parent=67 // pred_check_branch
          %602 = sbr.rel (%p600) target = $region72
        $region71: #{tpu_custom_call.1} parent=67 // pred_region
          %s603 = sand.u32 %s161, 1
          %s604 = scalar_lea.sflag [#allocation7], %s603
          %s605 = sand.u32 %s161, 1
          %s606 = smul.addr %s605, 16
          %s607 = scalar_lea.vmem [#allocation11], %s606
          %608 = dma.done %s604, 256
        $region72: #{tpu_custom_call.1} parent=67 // pred_fallthru
          _
      $region68: #{tpu_custom_call.1} parent=5 // pred_fallthru
        _
    $region6: #{tpu_custom_call.1} parent=1 // loop_footer
      %s27 = sadd.s32 1, %s23
    $region7: #{tpu_custom_call.1} parent=1 // loop_footer_branch
      %22 = sbr.rel target = $region3
    $region8: #{tpu_custom_call.1} parent=1 // loop_exit
      _
    %609 = vsyncpa [#allocation6], 1
    %s610 = scalar_lea.sflag [#allocation6], 1
    %611 = vsyncpa %s610, 1
    %612 = vsyncpa [#allocation9], 1
    %613 = vsyncpa [#allocation7], 1
    %s614 = scalar_lea.sflag [#allocation7], 1
    %615 = vsyncpa %s614, 1

</llo_original>
